<compile_context>
chip_gen: v7x
topology: tpu7x:2x2x1
jax: 0.10.0
libtpu: 0.0.40
codegen_flags: <defaults>
</compile_context>

<pallas_src>
import jax
import jax.numpy as jnp
from jax.experimental import pallas as pl
from jax.experimental.pallas import tpu as pltpu


def _interp_matrix(n_in: int, n_out: int) -> jnp.ndarray:
    """Row-stochastic (n_out, n_in) 1-D linear interpolation matrix implementing
    align_corners=True upsampling (PyTorch nn.Upsample semantics)."""
    if n_in == 1:
        return jnp.ones((n_out, 1), dtype=jnp.float32)
    src = jnp.arange(n_out, dtype=jnp.float32) * (n_in - 1) / (n_out - 1)
    lo = jnp.clip(jnp.floor(src).astype(jnp.int32), 0, n_in - 2)
    frac = src - lo.astype(jnp.float32)
    return ((1.0 - frac)[:, None] * jax.nn.one_hot(lo, n_in, dtype=jnp.float32)
            + frac[:, None] * jax.nn.one_hot(lo + 1, n_in, dtype=jnp.float32))


def _upsample_operator(h: int, w: int, dtype=jnp.bfloat16) -> jnp.ndarray:
    """kron(Wh, Ww)^T : (H*W, H_out*W_out) bilinear x2 operator (row-major flatten)."""
    wh = _interp_matrix(h, 2 * h)          # (H_out, H)
    ww = _interp_matrix(w, 2 * w)          # (W_out, W)
    return jnp.kron(wh, ww).T.astype(dtype)


def _pick_nb(n: int, c_out: int, target_rows: int = 256, max_nb: int = 32) -> int:
    """Batch elements per grid step: aim for Nb*C_out >= 128/256 MXU rows, divide N."""
    nb = max(1, min(n, max_nb, -(-target_rows // c_out)))
    while n % nb != 0:
        nb -= 1
    return nb


def _pick_vmem_limit_bytes() -> int:
    """Per-generation VMEM budget: ~3/4 of physical, capped at 100 MiB."""
    phys = 128 * 1024 * 1024
    try:
        info = pltpu.get_tpu_info()
        phys = int(getattr(info, "vmem_capacity_bytes", phys))
    except Exception:
        pass
    return int(min(phys * 3 // 4, 100 * 1024 * 1024))


def _make_upblock_kernel(nb: int, c_out: int):
    def kernel(x_ref, wc_ref, b_ref, ut_ref, o_ref, z_ref):
        # x_ref : (nb, C_in, HW)       f32   pure reshape of the input (cast here)
        # wc_ref: (C_out, C_in)        bf16  1x1-conv weight
        # b_ref : (C_out, 1)           f32   conv bias
        # ut_ref: (HW, HW_out)         bf16  kron(Wh, Ww)^T bilinear-upsample operator
        # o_ref : (nb, C_out, HW_out)  out_dtype
        # z_ref : (nb*C_out, HW)       bf16  VMEM scratch (conv output, pre-upsample)
        wc = wc_ref[...]
        bias = b_ref[...]
        # 1x1 conv (+ bias) on the LOW-RES image, one tiny matmul per batch element;
        # results packed contiguously along sublanes so the upsample is ONE big matmul.
        for i in range(nb):  # static unroll; nb is small and known at trace time
            x_i = x_ref[i].astype(jnp.bfloat16)                            # (C_in, HW)
            z = jnp.dot(wc, x_i, preferred_element_type=jnp.float32) + bias
            z_ref[i * c_out:(i + 1) * c_out, :] = z.astype(jnp.bfloat16)
        # Bilinear x2 upsample, fused across the batch:
        # (nb*C_out, HW) @ (HW, HW_out) with f32 accumulation.
        out = jnp.dot(z_ref[...], ut_ref[...], preferred_element_type=jnp.float32)
        for i in range(nb):
            o_ref[i] = out[i * c_out:(i + 1) * c_out, :].astype(o_ref.dtype)
    return kernel


def upblock_forward(x, wconv, bconv, *, out_dtype=jnp.float32):
    """x: (N, C_in, H, W) f32, wconv: (C_out, C_in), bconv: (C_out,)
    -> (N, C_out, 2H, 2W) out_dtype (default f32; pass bf16 to halve writeback)."""
    N, C_in, H, W = x.shape
    C_out = wconv.shape[0]
    H_out, W_out = 2 * H, 2 * W
    HW, HW_out = H * W, H_out * W_out

    nb = _pick_nb(N, C_out)
    x_flat = x.reshape(N, C_in, HW)                       # pure reshape, stays f32
    wc = wconv.astype(jnp.bfloat16)                       # tiny
    b2 = bconv.reshape(C_out, 1).astype(jnp.float32)
    ut = _upsample_operator(H, W)                         # (HW, HW_out) bf16

    out_itemsize = jnp.dtype(out_dtype).itemsize
    cost = pl.CostEstimate(
        flops=2 * N * C_out * C_in * HW + 2 * N * C_out * HW * HW_out,
        transcendentals=0,
        bytes_accessed=(x_flat.size * x_flat.dtype.itemsize
                        + wc.size * 2 + b2.size * 4 + ut.size * 2
                        + N * C_out * HW_out * out_itemsize),
    )

    def build(single_buffer: bool):
        def inv(shape, imap):
            # Grid-invariant operands: single-buffer them (constant index_map).
            if single_buffer and hasattr(pl, "Buffered"):
                try:
                    return pl.BlockSpec(shape, imap, pipeline_mode=pl.Buffered(1))
                except TypeError:
                    pass
            return pl.BlockSpec(shape, imap)

        return pl.pallas_call(
            _make_upblock_kernel(nb, C_out),
            out_shape=jax.ShapeDtypeStruct((N, C_out, HW_out), out_dtype),
            grid_spec=pltpu.PrefetchScalarGridSpec(
                num_scalar_prefetch=0,
                grid=(N // nb,),
                in_specs=[
                    pl.BlockSpec((nb, C_in, HW), lambda n: (n, 0, 0)),
                    inv((C_out, C_in), lambda n: (0, 0)),
                    inv((C_out, 1), lambda n: (0, 0)),
                    inv((HW, HW_out), lambda n: (0, 0)),
                ],
                out_specs=pl.BlockSpec((nb, C_out, HW_out), lambda n: (n, 0, 0)),
                scratch_shapes=[pltpu.VMEM((nb * C_out, HW), jnp.bfloat16)],
            ),
            compiler_params=pltpu.CompilerParams(
                dimension_semantics=("parallel",),
                vmem_limit_bytes=_pick_vmem_limit_bytes(),
            ),
            cost_estimate=cost,
        )

    try:
        out_flat = build(True)(x_flat, wc, b2, ut)
    except Exception:
        # Fallback without single-buffering in case pipeline_mode is unsupported.
        out_flat = build(False)(x_flat, wc, b2, ut)

    return out_flat.reshape(N, C_out, H_out, W_out)


def _reference_module(x, wconv, bconv):
    """Pure-JAX f32 reference with the original module semantics
    (bilinear x2 upsample, align_corners=True, then 1x1 conv + bias)."""
    hi = jax.lax.Precision.HIGHEST
    N, C_in, H, W = x.shape
    wh = _interp_matrix(H, 2 * H)
    ww = _interp_matrix(W, 2 * W)
    up = jnp.einsum('ow,nchw->ncho', ww, x, precision=hi)
    up = jnp.einsum('oh,nchw->ncow', wh, up, precision=hi)
    return (jnp.einsum('oc,nchw->nohw', wconv, up, precision=hi)
            + bconv[None, :, None, None])


def _reference_kernel_math(x, wconv, bconv):
    """Pure-JAX emulation of the exact arithmetic the kernel performs
    (bf16 operands, f32 accumulation, bias added post-conv) — tight-tolerance check."""
    hi = jax.lax.Precision.HIGHEST
    N, C_in, H, W = x.shape
    C_out = wconv.shape[0]
    HW = H * W
    xq = x.reshape(N, C_in, HW).astype(jnp.bfloat16).astype(jnp.float32)
    wq = wconv.astype(jnp.bfloat16).astype(jnp.float32)
    uq = _upsample_operator(H, W).astype(jnp.float32)
    z = jnp.einsum('oc,nch->noh', wq, xq, precision=hi) + bconv[None, :, None]
    zq = z.astype(jnp.bfloat16).astype(jnp.float32)
    out = jnp.einsum('noh,hk->nok', zq, uq, precision=hi)
    return out.reshape(N, C_out, 2 * H, 2 * W)


if __name__ == "__main__":
    key = jax.random.PRNGKey(0)
    k_x, k_w, k_b = jax.random.split(key, 3)

    # Small shapes consistent with the module: batch=2, in_channels=4,
    # out_channels=8, spatial 16x16  ->  output (2, 8, 32, 32).
    N, C_in, C_out, H, W = 2, 4, 8, 16, 16

    x = jax.random.normal(k_x, (N, C_in, H, W), dtype=jnp.float32)
    # Conv2d(in, out, k=1) -> weight (C_out, C_in), bias (C_out,)
    wconv = jax.random.normal(k_w, (C_out, C_in), dtype=jnp.float32) * 0.1
    bconv = jax.random.normal(k_b, (C_out,), dtype=jnp.float32) * 0.1

    out = jax.block_until_ready(upblock_forward(x, wconv, bconv))
    assert out.shape == (N, C_out, 2 * H, 2 * W), out.shape

    # Tight check: kernel matches its own (bf16-operand, f32-accumulate) math.
    ref_q = _reference_kernel_math(x, wconv, bconv)
    assert jnp.allclose(out, ref_q, atol=1e-4, rtol=1e-4), float(
        jnp.max(jnp.abs(out - ref_q)))

    # Semantic check: close to the exact f32 UpBlock forward (bf16 operand tolerance).
    ref = _reference_module(x, wconv, bconv)
    assert jnp.allclose(out, ref, atol=5e-2, rtol=5e-2), float(
        jnp.max(jnp.abs(out - ref)))

    print("KERNEL_OK")
</pallas_src>

<mosaic_0001>
module attributes {stable_mosaic.version = 11 : i64} {
  func.func @kernel(%arg0: i32, %arg1: memref<2x4x256xf32, #tpu.memory_space<vmem>>, %arg2: memref<8x4xbf16, #tpu.memory_space<vmem>>, %arg3: memref<8x1xf32, #tpu.memory_space<vmem>>, %arg4: memref<256x1024xbf16, #tpu.memory_space<vmem>>, %arg5: memref<2x8x1024xf32, #tpu.memory_space<vmem>>, %arg6: memref<16x256xbf16, #tpu.memory_space<vmem>>) attributes {dimension_semantics = [#tpu.dimension_semantics<parallel>], iteration_bounds = array<i64: 1>, scalar_prefetch = 0 : i64, scratch_operands = 1 : i64, tpu.core_type = #tpu.core_type<tc>, window_params = [{transform_indices = @transform_0, window_bounds = array<i64: 2, 4, 256>}, {pipeline_mode = #tpu.pipeline_mode<synchronous>, transform_indices = @transform_1, window_bounds = array<i64: 8, 4>}, {pipeline_mode = #tpu.pipeline_mode<synchronous>, transform_indices = @transform_2, window_bounds = array<i64: 8, 1>}, {pipeline_mode = #tpu.pipeline_mode<synchronous>, transform_indices = @transform_3, window_bounds = array<i64: 256, 1024>}, {transform_indices = @transform_4, window_bounds = array<i64: 2, 8, 1024>}]} {
    %c0 = arith.constant 0 : index
    %c0_0 = arith.constant 0 : index
    %0 = vector.load %arg2[%c0, %c0_0] : memref<8x4xbf16, #tpu.memory_space<vmem>>, vector<8x4xbf16>
    %c0_1 = arith.constant 0 : index
    %c0_2 = arith.constant 0 : index
    %1 = vector.load %arg3[%c0_1, %c0_2] : memref<8x1xf32, #tpu.memory_space<vmem>>, vector<8x1xf32>
    %c0_3 = arith.constant 0 : index
    %c0_4 = arith.constant 0 : index
    %c0_5 = arith.constant 0 : index
    %2 = vector.load %arg1[%c0_3, %c0_4, %c0_5] : memref<2x4x256xf32, #tpu.memory_space<vmem>>, vector<1x4x256xf32>
    %3 = vector.shape_cast %2 : vector<1x4x256xf32> to vector<4x256xf32>
    %4 = arith.truncf %3 : vector<4x256xf32> to vector<4x256xbf16>
    %cst = arith.constant dense<0.000000e+00> : vector<8x256xf32>
    %5 = tpu.matmul %0, %4, %cst {dimension_numbers = #tpu.dot_dimension_numbers<[1], [0], [0], [1], [0, 0, 1, 1], [], []>} : vector<8x4xbf16>, vector<4x256xbf16>, vector<8x256xf32> -> vector<8x256xf32>
    %6 = vector.broadcast %1 : vector<8x1xf32> to vector<8x256xf32>
    %7 = arith.addf %5, %6 : vector<8x256xf32>
    %8 = arith.truncf %7 : vector<8x256xf32> to vector<8x256xbf16>
    %c0_6 = arith.constant 0 : index
    %c0_7 = arith.constant 0 : index
    %9 = vector.load %arg6[%c0_6, %c0_7] : memref<16x256xbf16, #tpu.memory_space<vmem>>, vector<8x256xbf16>
    tpu.vector_store %arg6[%c0_6, %c0_7], %8 {strides = array<i32>} : memref<16x256xbf16, #tpu.memory_space<vmem>>, vector<8x256xbf16>,
    %c1 = arith.constant 1 : index
    %c0_8 = arith.constant 0 : index
    %c0_9 = arith.constant 0 : index
    %10 = vector.load %arg1[%c1, %c0_8, %c0_9] : memref<2x4x256xf32, #tpu.memory_space<vmem>>, vector<1x4x256xf32>
    %11 = vector.shape_cast %10 : vector<1x4x256xf32> to vector<4x256xf32>
    %12 = arith.truncf %11 : vector<4x256xf32> to vector<4x256xbf16>
    %cst_10 = arith.constant dense<0.000000e+00> : vector<8x256xf32>
    %13 = tpu.matmul %0, %12, %cst_10 {dimension_numbers = #tpu.dot_dimension_numbers<[1], [0], [0], [1], [0, 0, 1, 1], [], []>} : vector<8x4xbf16>, vector<4x256xbf16>, vector<8x256xf32> -> vector<8x256xf32>
    %14 = vector.broadcast %1 : vector<8x1xf32> to vector<8x256xf32>
    %15 = arith.addf %13, %14 : vector<8x256xf32>
    %16 = arith.truncf %15 : vector<8x256xf32> to vector<8x256xbf16>
    %c8 = arith.constant 8 : index
    %c0_11 = arith.constant 0 : index
    %17 = vector.load %arg6[%c8, %c0_11] : memref<16x256xbf16, #tpu.memory_space<vmem>>, vector<8x256xbf16>
    tpu.vector_store %arg6[%c8, %c0_11], %16 {strides = array<i32>} : memref<16x256xbf16, #tpu.memory_space<vmem>>, vector<8x256xbf16>,
    %c0_12 = arith.constant 0 : index
    %c0_13 = arith.constant 0 : index
    %18 = vector.load %arg6[%c0_12, %c0_13] : memref<16x256xbf16, #tpu.memory_space<vmem>>, vector<16x256xbf16>
    %c0_14 = arith.constant 0 : index
    %c0_15 = arith.constant 0 : index
    %19 = vector.load %arg4[%c0_14, %c0_15] : memref<256x1024xbf16, #tpu.memory_space<vmem>>, vector<256x1024xbf16>
    %cst_16 = arith.constant dense<0.000000e+00> : vector<16x1024xf32>
    %20 = tpu.matmul %18, %19, %cst_16 {dimension_numbers = #tpu.dot_dimension_numbers<[1], [0], [0], [1], [0, 0, 1, 1], [], []>} : vector<16x256xbf16>, vector<256x1024xbf16>, vector<16x1024xf32> -> vector<16x1024xf32>
    %21 = vector.extract_strided_slice %20 {offsets = [0, 0], sizes = [8, 1024], strides = [1, 1]} : vector<16x1024xf32> to vector<8x1024xf32>
    %c0_17 = arith.constant 0 : index
    %c0_18 = arith.constant 0 : index
    %c0_19 = arith.constant 0 : index
    %22 = vector.load %arg5[%c0_17, %c0_18, %c0_19] : memref<2x8x1024xf32, #tpu.memory_space<vmem>>, vector<1x8x1024xf32>
    %23 = vector.shape_cast %22 : vector<1x8x1024xf32> to vector<8x1024xf32>
    %24 = vector.shape_cast %21 : vector<8x1024xf32> to vector<1x8x1024xf32>
    tpu.vector_store %arg5[%c0_17, %c0_18, %c0_19], %24 {strides = array<i32>} : memref<2x8x1024xf32, #tpu.memory_space<vmem>>, vector<1x8x1024xf32>,
    %25 = vector.extract_strided_slice %20 {offsets = [8, 0], sizes = [8, 1024], strides = [1, 1]} : vector<16x1024xf32> to vector<8x1024xf32>
    %c1_20 = arith.constant 1 : index
    %c0_21 = arith.constant 0 : index
    %c0_22 = arith.constant 0 : index
    %26 = vector.load %arg5[%c1_20, %c0_21, %c0_22] : memref<2x8x1024xf32, #tpu.memory_space<vmem>>, vector<1x8x1024xf32>
    %27 = vector.shape_cast %26 : vector<1x8x1024xf32> to vector<8x1024xf32>
    %28 = vector.shape_cast %25 : vector<8x1024xf32> to vector<1x8x1024xf32>
    tpu.vector_store %arg5[%c1_20, %c0_21, %c0_22], %28 {strides = array<i32>} : memref<2x8x1024xf32, #tpu.memory_space<vmem>>, vector<1x8x1024xf32>,
    return
  }
  func.func @transform_0(%arg0: i32) -> (i32, i32, i32) {
    %c0_i32 = arith.constant 0 : i32
    %c0_i32_0 = arith.constant 0 : i32
    %c0_i32_1 = arith.constant 0 : i32
    return %arg0, %c0_i32, %c0_i32_0 : i32, i32, i32
  }
  func.func @transform_1(%arg0: i32) -> (i32, i32) {
    %c0_i32 = arith.constant 0 : i32
    %c0_i32_0 = arith.constant 0 : i32
    %c0_i32_1 = arith.constant 0 : i32
    return %c0_i32, %c0_i32_0 : i32, i32
  }
  func.func @transform_2(%arg0: i32) -> (i32, i32) {
    %c0_i32 = arith.constant 0 : i32
    %c0_i32_0 = arith.constant 0 : i32
    %c0_i32_1 = arith.constant 0 : i32
    return %c0_i32, %c0_i32_0 : i32, i32
  }
  func.func @transform_3(%arg0: i32) -> (i32, i32) {
    %c0_i32 = arith.constant 0 : i32
    %c0_i32_0 = arith.constant 0 : i32
    %c0_i32_1 = arith.constant 0 : i32
    return %c0_i32, %c0_i32_0 : i32, i32
  }
  func.func @transform_4(%arg0: i32) -> (i32, i32, i32) {
    %c0_i32 = arith.constant 0 : i32
    %c0_i32_0 = arith.constant 0 : i32
    %c0_i32_1 = arith.constant 0 : i32
    return %arg0, %c0_i32, %c0_i32_0 : i32, i32, i32
  }
}

module attributes {stable_mosaic.version = 11 : i64} {
  func.func @kernel(%arg0: i32, %arg1: memref<2x4x256xf32, #tpu.memory_space<vmem>>, %arg2: memref<8x4xbf16, #tpu.memory_space<vmem>>, %arg3: memref<8x1xf32, #tpu.memory_space<vmem>>, %arg4: memref<256x1024xbf16, #tpu.memory_space<vmem>>, %arg5: memref<2x8x1024xf32, #tpu.memory_space<vmem>>, %arg6: memref<16x256xbf16, #tpu.memory_space<vmem>>) attributes {dimension_semantics = [#tpu.dimension_semantics<parallel>], iteration_bounds = array<i64: 1>, scalar_prefetch = 0 : i64, scratch_operands = 1 : i64, tpu.core_type = #tpu.core_type<tc>, window_params = [{transform_indices = @transform_0, window_bounds = array<i64: 2, 4, 256>}, {pipeline_mode = #tpu.pipeline_mode<synchronous>, transform_indices = @transform_1, window_bounds = array<i64: 8, 4>}, {pipeline_mode = #tpu.pipeline_mode<synchronous>, transform_indices = @transform_2, window_bounds = array<i64: 8, 1>}, {pipeline_mode = #tpu.pipeline_mode<synchronous>, transform_indices = @transform_3, window_bounds = array<i64: 256, 1024>}, {transform_indices = @transform_4, window_bounds = array<i64: 2, 8, 1024>}]} {
    %c0 = arith.constant 0 : index
    %c0_0 = arith.constant 0 : index
    %0 = vector.load %arg2[%c0, %c0_0] : memref<8x4xbf16, #tpu.memory_space<vmem>>, vector<8x4xbf16>
    %c0_1 = arith.constant 0 : index
    %c0_2 = arith.constant 0 : index
    %1 = vector.load %arg3[%c0_1, %c0_2] : memref<8x1xf32, #tpu.memory_space<vmem>>, vector<8x1xf32>
    %c0_3 = arith.constant 0 : index
    %c0_4 = arith.constant 0 : index
    %c0_5 = arith.constant 0 : index
    %2 = vector.load %arg1[%c0_3, %c0_4, %c0_5] : memref<2x4x256xf32, #tpu.memory_space<vmem>>, vector<1x4x256xf32>
    %3 = vector.shape_cast %2 : vector<1x4x256xf32> to vector<4x256xf32>
    %4 = arith.truncf %3 : vector<4x256xf32> to vector<4x256xbf16>
    %cst = arith.constant dense<0.000000e+00> : vector<8x256xf32>
    %5 = tpu.matmul %0, %4, %cst {dimension_numbers = #tpu.dot_dimension_numbers<[1], [0], [0], [1], [0, 0, 1, 1], [], []>} : vector<8x4xbf16>, vector<4x256xbf16>, vector<8x256xf32> -> vector<8x256xf32>
    %6 = vector.broadcast %1 : vector<8x1xf32> to vector<8x256xf32>
    %7 = arith.addf %5, %6 : vector<8x256xf32>
    %8 = arith.truncf %7 : vector<8x256xf32> to vector<8x256xbf16>
    %c0_6 = arith.constant 0 : index
    %c0_7 = arith.constant 0 : index
    %9 = vector.load %arg6[%c0_6, %c0_7] : memref<16x256xbf16, #tpu.memory_space<vmem>>, vector<8x256xbf16>
    tpu.vector_store %arg6[%c0_6, %c0_7], %8 {strides = array<i32>} : memref<16x256xbf16, #tpu.memory_space<vmem>>, vector<8x256xbf16>,
    %c1 = arith.constant 1 : index
    %c0_8 = arith.constant 0 : index
    %c0_9 = arith.constant 0 : index
    %10 = vector.load %arg1[%c1, %c0_8, %c0_9] : memref<2x4x256xf32, #tpu.memory_space<vmem>>, vector<1x4x256xf32>
    %11 = vector.shape_cast %10 : vector<1x4x256xf32> to vector<4x256xf32>
    %12 = arith.truncf %11 : vector<4x256xf32> to vector<4x256xbf16>
    %cst_10 = arith.constant dense<0.000000e+00> : vector<8x256xf32>
    %13 = tpu.matmul %0, %12, %cst_10 {dimension_numbers = #tpu.dot_dimension_numbers<[1], [0], [0], [1], [0, 0, 1, 1], [], []>} : vector<8x4xbf16>, vector<4x256xbf16>, vector<8x256xf32> -> vector<8x256xf32>
    %14 = vector.broadcast %1 : vector<8x1xf32> to vector<8x256xf32>
    %15 = arith.addf %13, %14 : vector<8x256xf32>
    %16 = arith.truncf %15 : vector<8x256xf32> to vector<8x256xbf16>
    %c8 = arith.constant 8 : index
    %c0_11 = arith.constant 0 : index
    %17 = vector.load %arg6[%c8, %c0_11] : memref<16x256xbf16, #tpu.memory_space<vmem>>, vector<8x256xbf16>
    tpu.vector_store %arg6[%c8, %c0_11], %16 {strides = array<i32>} : memref<16x256xbf16, #tpu.memory_space<vmem>>, vector<8x256xbf16>,
    %c0_12 = arith.constant 0 : index
    %c0_13 = arith.constant 0 : index
    %18 = vector.load %arg6[%c0_12, %c0_13] : memref<16x256xbf16, #tpu.memory_space<vmem>>, vector<16x256xbf16>
    %c0_14 = arith.constant 0 : index
    %c0_15 = arith.constant 0 : index
    %19 = vector.load %arg4[%c0_14, %c0_15] : memref<256x1024xbf16, #tpu.memory_space<vmem>>, vector<256x1024xbf16>
    %cst_16 = arith.constant dense<0.000000e+00> : vector<16x1024xf32>
    %20 = tpu.matmul %18, %19, %cst_16 {dimension_numbers = #tpu.dot_dimension_numbers<[1], [0], [0], [1], [0, 0, 1, 1], [], []>} : vector<16x256xbf16>, vector<256x1024xbf16>, vector<16x1024xf32> -> vector<16x1024xf32>
    %21 = vector.extract_strided_slice %20 {offsets = [0, 0], sizes = [8, 1024], strides = [1, 1]} : vector<16x1024xf32> to vector<8x1024xf32>
    %c0_17 = arith.constant 0 : index
    %c0_18 = arith.constant 0 : index
    %c0_19 = arith.constant 0 : index
    %22 = vector.load %arg5[%c0_17, %c0_18, %c0_19] : memref<2x8x1024xf32, #tpu.memory_space<vmem>>, vector<1x8x1024xf32>
    %23 = vector.shape_cast %22 : vector<1x8x1024xf32> to vector<8x1024xf32>
    %24 = vector.shape_cast %21 : vector<8x1024xf32> to vector<1x8x1024xf32>
    tpu.vector_store %arg5[%c0_17, %c0_18, %c0_19], %24 {strides = array<i32>} : memref<2x8x1024xf32, #tpu.memory_space<vmem>>, vector<1x8x1024xf32>,
    %25 = vector.extract_strided_slice %20 {offsets = [8, 0], sizes = [8, 1024], strides = [1, 1]} : vector<16x1024xf32> to vector<8x1024xf32>
    %c1_20 = arith.constant 1 : index
    %c0_21 = arith.constant 0 : index
    %c0_22 = arith.constant 0 : index
    %26 = vector.load %arg5[%c1_20, %c0_21, %c0_22] : memref<2x8x1024xf32, #tpu.memory_space<vmem>>, vector<1x8x1024xf32>
    %27 = vector.shape_cast %26 : vector<1x8x1024xf32> to vector<8x1024xf32>
    %28 = vector.shape_cast %25 : vector<8x1024xf32> to vector<1x8x1024xf32>
    tpu.vector_store %arg5[%c1_20, %c0_21, %c0_22], %28 {strides = array<i32>} : memref<2x8x1024xf32, #tpu.memory_space<vmem>>, vector<1x8x1024xf32>,
    return
  }
  func.func @transform_0(%arg0: i32) -> (i32, i32, i32) {
    %c0_i32 = arith.constant 0 : i32
    %c0_i32_0 = arith.constant 0 : i32
    %c0_i32_1 = arith.constant 0 : i32
    return %arg0, %c0_i32, %c0_i32_0 : i32, i32, i32
  }
  func.func @transform_1(%arg0: i32) -> (i32, i32) {
    %c0_i32 = arith.constant 0 : i32
    %c0_i32_0 = arith.constant 0 : i32
    %c0_i32_1 = arith.constant 0 : i32
    return %c0_i32, %c0_i32_0 : i32, i32
  }
  func.func @transform_2(%arg0: i32) -> (i32, i32) {
    %c0_i32 = arith.constant 0 : i32
    %c0_i32_0 = arith.constant 0 : i32
    %c0_i32_1 = arith.constant 0 : i32
    return %c0_i32, %c0_i32_0 : i32, i32
  }
  func.func @transform_3(%arg0: i32) -> (i32, i32) {
    %c0_i32 = arith.constant 0 : i32
    %c0_i32_0 = arith.constant 0 : i32
    %c0_i32_1 = arith.constant 0 : i32
    return %c0_i32, %c0_i32_0 : i32, i32
  }
  func.func @transform_4(%arg0: i32) -> (i32, i32, i32) {
    %c0_i32 = arith.constant 0 : i32
    %c0_i32_0 = arith.constant 0 : i32
    %c0_i32_1 = arith.constant 0 : i32
    return %arg0, %c0_i32, %c0_i32_0 : i32, i32, i32
  }
}

</mosaic_0001>

<llo_original>
// kernel: tpu_custom_call.1
$region0: #{tpu_custom_call.1}
  #allocation0 [shape = 'u32[]', space=smem, size = 0x4, offset = 0x4, fixed_abs, tag = 'smem constant byte address 0x4 - core index']
  #allocation1 [shape = 'u32[144,128]{1,0:T(1,128)}', space=vmem, size = 0x12000, scoped, tag = 'internal scratch']
  #allocation2 [shape = 'bf16[16,256]{1,0:T(16,128)(2,1)}', space=vmem, size = 0x2000, scoped, tag = 'scratch operand']
  %s0 = inlined_call_operand.hbm [shape: f32[2,4,256], index: 0, kind: input, shape index: {}]
  %s1 = inlined_call_operand.hbm [shape: bf16[8,4], index: 1, kind: input, shape index: {}]
  %s2 = inlined_call_operand.hbm [shape: f32[8,1], index: 2, kind: input, shape index: {}]
  %s3 = inlined_call_operand.hbm [shape: bf16[256,1024], index: 3, kind: input, shape index: {}]
  %s4 = inlined_call_operand.hbm [shape: f32[2,8,1024], index: 4, kind: output, shape index: {}]
  %s5 = sld [smem:[#allocation0]]
  $region42: #{tpu_custom_call.1} parent=0
    _
  %s7 = ssub.s32 1, %s5
  %s8 = scalar_select 0, %s7, %s5
  $region1: #{tpu_custom_call.1} parent=0
    #allocation3 [shape = 'u8[8192]{0}', space=vmem, size = 0x2000, scoped, tag = 'input window, operand 0, single buffered']
    #allocation4 [shape = 's32[1]{0}', space=sflag, size = 0x4, scoped, tag = 'scoped memory for tpu_custom_call.1']
    #allocation5 [shape = 's32[1]{0}', space=sflag, size = 0x4, scoped, tag = 'scoped memory for tpu_custom_call.1']
    #allocation6 [shape = 'u8[2048]{0}', space=vmem, size = 0x800, scoped, tag = 'input window, operand 1, single buffered']
    #allocation7 [shape = 's32[1]{0}', space=sflag, size = 0x4, scoped, tag = 'scoped memory for tpu_custom_call.1']
    #allocation8 [shape = 'u8[4096]{0}', space=vmem, size = 0x1000, scoped, tag = 'input window, operand 2, single buffered']
    #allocation9 [shape = 'u8[524288]{0}', space=vmem, size = 0x80000, scoped, tag = 'input window, operand 3, single buffered']
    #allocation10 [shape = 's32[1]{0}', space=sflag, size = 0x4, scoped, tag = 'scoped memory for tpu_custom_call.1']
    #allocation11 [shape = 'u8[65536]{0}', space=vmem, size = 0x10000, scoped, tag = 'output window, operand 0, single buffered']
    %9 = vsyncpa [#allocation4], 0
    %10 = vsyncpa [#allocation7], 0
    %11 = vsyncpa [#allocation10], 0
    %12 = vsyncpa [#allocation5], 0
    // Predicated region
    $region2: #{tpu_custom_call.1} parent=1 // pred_check
      _
    $region3: #{tpu_custom_call.1} parent=1 // pred_check_branch
      %14 = sbr.rel (0) target = $region5
    $region4: #{tpu_custom_call.1} parent=1 // pred_region
      %s16 = ssub.s32 256, 256
      %17 = vsyncadd [#allocation4], %s16
      %s18 = sshll.u32 [#allocation3], 4
      %s19 = int_to_ptr.vmem [resolvable:$true] %s18
      %24 = dma.hbm_to_vmem [thread:$0]  %s0, 256, %s19, [#allocation4], 128, 128, 8
    $region5: #{tpu_custom_call.1} parent=1 // pred_fallthru
      _
    // Predicated region
    $region6: #{tpu_custom_call.1} parent=1 // pred_check
      _
    $region7: #{tpu_custom_call.1} parent=1 // pred_check_branch
      %26 = sbr.rel (0) target = $region9
    $region8: #{tpu_custom_call.1} parent=1 // pred_region
      %s28 = ssub.s32 64, 64
      %29 = vsyncadd [#allocation7], %s28
      %s31 = sshll.u32 [#allocation6], 4
      %s32 = int_to_ptr.vmem [resolvable:$true] %s31
      %34 = dma.hbm_to_vmem [thread:$0]  %s1, 64, %s32, [#allocation7]
    $region9: #{tpu_custom_call.1} parent=1 // pred_fallthru
      _
    // Predicated region
    $region10: #{tpu_custom_call.1} parent=1 // pred_check
      _
    $region11: #{tpu_custom_call.1} parent=1 // pred_check_branch
      %36 = sbr.rel (0) target = $region13
    $region12: #{tpu_custom_call.1} parent=1 // pred_region
      %s38 = ssub.s32 128, 128
      %39 = vsyncadd [#allocation7], %s38
      %s41 = sshll.u32 [#allocation8], 4
      %s42 = int_to_ptr.vmem [resolvable:$true] %s41
      %44 = dma.hbm_to_vmem [thread:$0]  %s2, 128, %s42, [#allocation7]
    $region13: #{tpu_custom_call.1} parent=1 // pred_fallthru
      _
    // Predicated region
    $region14: #{tpu_custom_call.1} parent=1 // pred_check
      _
    $region15: #{tpu_custom_call.1} parent=1 // pred_check_branch
      %46 = sbr.rel (0) target = $region17
    $region16: #{tpu_custom_call.1} parent=1 // pred_region
      %s48 = ssub.s32 16384, 16384
      %49 = vsyncadd [#allocation10], %s48
      %s50 = sshll.u32 [#allocation9], 4
      %s51 = int_to_ptr.vmem [resolvable:$true] %s50
      %56 = dma.hbm_to_vmem [thread:$0]  %s3, 16384, %s51, [#allocation10], 512, 512, 32
    $region17: #{tpu_custom_call.1} parent=1 // pred_fallthru
      _
    // Predicated region
    $region18: #{tpu_custom_call.1} parent=1 // pred_check
      _
    $region19: #{tpu_custom_call.1} parent=1 // pred_check_branch
      %58 = sbr.rel (0) target = $region21
    $region20: #{tpu_custom_call.1} parent=1 // pred_region
      %59 = dma.done [#allocation4], 256
    $region21: #{tpu_custom_call.1} parent=1 // pred_fallthru
      _
    // Predicated region
    $region22: #{tpu_custom_call.1} parent=1 // pred_check
      _
    $region23: #{tpu_custom_call.1} parent=1 // pred_check_branch
      %61 = sbr.rel (0) target = $region25
    $region24: #{tpu_custom_call.1} parent=1 // pred_region
      %62 = dma.done [#allocation7], 64
    $region25: #{tpu_custom_call.1} parent=1 // pred_fallthru
      _
    // Predicated region
    $region26: #{tpu_custom_call.1} parent=1 // pred_check
      _
    $region27: #{tpu_custom_call.1} parent=1 // pred_check_branch
      %64 = sbr.rel (0) target = $region29
    $region28: #{tpu_custom_call.1} parent=1 // pred_region
      %65 = dma.done [#allocation7], 128
    $region29: #{tpu_custom_call.1} parent=1 // pred_fallthru
      _
    // Predicated region
    $region30: #{tpu_custom_call.1} parent=1 // pred_check
      _
    $region31: #{tpu_custom_call.1} parent=1 // pred_check_branch
      %67 = sbr.rel (0) target = $region33
    $region32: #{tpu_custom_call.1} parent=1 // pred_region
      %68 = dma.done [#allocation10], 16384
    $region33: #{tpu_custom_call.1} parent=1 // pred_fallthru
      _
    %v70 = vld [vmem:[#allocation6] sm:$0xf]
    %v71 = vld [vmem:[#allocation8] sm:$0xff]
    %v72 = vld [vmem:[#allocation3] sm:$0xff]
    %v74 = vcombine.high %v72, %v72
    %v76 = vpack.c.bf16 %v72, %v72
    %v77 = vpack.c.bf16 %v74, %v74
    %79 = vset.pattern.permute.xlu0 0
    %80 = vperm.xlu0 %79, %v71
    %v81 = vpop.permute.xlu0 %80
    %vm83 = vcmask 31744
    %v85 = vsel %vm83, %v70, 0
    %vm87 = vcmask 1041408
    %v89 = vsel %vm87, %v76, 0
    %v92 = vsel %vm87, %v77, 0
    %94 = vmatprep.subr.bf16.mxu0 %v92
    %95 = vmatpush1.bf16.msra.mxu0 %v89
    %96 = vmatprep.subr.bf16.mxu0 0
    %97 = vmatpush1.bf16.msra.mxu0 0
    %98 = vmatprep.subr.bf16.mxu0 0
    %99 = vmatpush1.bf16.msra.mxu0 0
    %100 = vmatprep.subr.bf16.mxu0 0
    %101 = vmatpush1.bf16.msra.mxu0 0
    %102 = vmatprep.subr.bf16.mxu0 0
    %103 = vmatpush1.bf16.msra.mxu0 0
    %104 = vmatprep.subr.bf16.mxu0 0
    %105 = vmatpush1.bf16.msra.mxu0 0
    %106 = vmatprep.subr.bf16.mxu0 0
    %107 = vmatpush1.bf16.msra.mxu0 0
    %108 = vmatprep.subr.bf16.mxu0 0
    %109 = vmatpush1.bf16.msra.mxu0 0
    %110 = vmatprep.subr.bf16.mxu0 0
    %111 = vmatpush1.bf16.msra.mxu0 0
    %112 = vmatprep.subr.bf16.mxu0 0
    %113 = vmatpush1.bf16.msra.mxu0 0
    %114 = vmatprep.subr.bf16.mxu0 0
    %115 = vmatpush1.bf16.msra.mxu0 0
    %116 = vmatprep.subr.bf16.mxu0 0
    %117 = vmatpush1.bf16.msra.mxu0 0
    %118 = vmatprep.subr.bf16.mxu0 0
    %119 = vmatpush1.bf16.msra.mxu0 0
    %120 = vmatprep.subr.bf16.mxu0 0
    %121 = vmatpush1.bf16.msra.mxu0 0
    %122 = vmatprep.subr.bf16.mxu0 0
    %123 = vmatpush1.bf16.msra.mxu0 0
    %124 = vmatprep.subr.bf16.mxu0 0
    %125 = vmatpush1.bf16.msra.mxu0 0
    %126 = vmatprep.mubr.bf16.mxu0 0
    %127 = vmatmul.mubr.bf16.gmra.mrb[0].mxu0 %v85
    %v128 = vpop.f32.mrb[0].mxu0
    %v129 = vadd.f32 %v81, %v128
    %v130 = vpop.f32.mrb[0].mxu0
    %v131 = vadd.f32 %v81, %v130
    %v132 = vpop.f32.mrb[0].mxu0
    %v133 = vpop.f32.mrb[0].mxu0
    %134 = vdwg.mxu0
    %v135 = vpack.c.bf16 %v129, %v129
    %v136 = vpack.c.bf16 %v131, %v131
    %137 = vst [vmem:[#allocation2] sm:$0xf] %v135
    %138 = vst [vmem:[#allocation2 + $0x8] sm:$0xf] %v136
    %s139 = scalar_lea.vmem [#allocation3], 8
    %v140 = vld [vmem:[%s139] sm:$0xff]
    %v142 = vcombine.high %v140, %v140
    %v144 = vpack.c.bf16 %v140, %v140
    %v145 = vpack.c.bf16 %v142, %v142
    %v147 = vsel %vm87, %v144, 0
    %v150 = vsel %vm87, %v145, 0
    %152 = vmatprep.subr.bf16.mxu0 %v150
    %153 = vmatpush1.bf16.msra.mxu0 %v147
    %154 = vmatprep.subr.bf16.mxu0 0
    %155 = vmatpush1.bf16.msra.mxu0 0
    %156 = vmatprep.subr.bf16.mxu0 0
    %157 = vmatpush1.bf16.msra.mxu0 0
    %158 = vmatprep.subr.bf16.mxu0 0
    %159 = vmatpush1.bf16.msra.mxu0 0
    %160 = vmatprep.subr.bf16.mxu0 0
    %161 = vmatpush1.bf16.msra.mxu0 0
    %162 = vmatprep.subr.bf16.mxu0 0
    %163 = vmatpush1.bf16.msra.mxu0 0
    %164 = vmatprep.subr.bf16.mxu0 0
    %165 = vmatpush1.bf16.msra.mxu0 0
    %166 = vmatprep.subr.bf16.mxu0 0
    %167 = vmatpush1.bf16.msra.mxu0 0
    %168 = vmatprep.subr.bf16.mxu0 0
    %169 = vmatpush1.bf16.msra.mxu0 0
    %170 = vmatprep.subr.bf16.mxu0 0
    %171 = vmatpush1.bf16.msra.mxu0 0
    %172 = vmatprep.subr.bf16.mxu0 0
    %173 = vmatpush1.bf16.msra.mxu0 0
    %174 = vmatprep.subr.bf16.mxu0 0
    %175 = vmatpush1.bf16.msra.mxu0 0
    %176 = vmatprep.subr.bf16.mxu0 0
    %177 = vmatpush1.bf16.msra.mxu0 0
    %178 = vmatprep.subr.bf16.mxu0 0
    %179 = vmatpush1.bf16.msra.mxu0 0
    %180 = vmatprep.subr.bf16.mxu0 0
    %181 = vmatpush1.bf16.msra.mxu0 0
    %182 = vmatprep.subr.bf16.mxu0 0
    %183 = vmatpush1.bf16.msra.mxu0 0
    %184 = vmatprep.mubr.bf16.mxu0 0
    %185 = vmatmul.mubr.bf16.gmra.mrb[0].mxu0 %v85
    %v186 = vpop.f32.mrb[0].mxu0
    %v187 = vadd.f32 %v81, %v186
    %v188 = vpop.f32.mrb[0].mxu0
    %v189 = vadd.f32 %v81, %v188
    %v190 = vpop.f32.mrb[0].mxu0
    %v191 = vpop.f32.mrb[0].mxu0
    %192 = vdwg.mxu0
    %v193 = vpack.c.bf16 %v187, %v187
    %v194 = vpack.c.bf16 %v189, %v189
    %v197 = vrot.slane %v193, 4
    %v198 = vrot.slane %v194, 4
    %201 = vst [vmem:[#allocation2] sm:$0xf0] %v197
    %202 = vst [vmem:[#allocation2 + $0x8] sm:$0xf0] %v198
    %v203 = vld [vmem:[#allocation2] sm:$0xff]
    %v204 = vld [vmem:[#allocation2 + $0x8] sm:$0xff]
    %v205 = vld [vmem:[#allocation9] sm:$0xff]
    %v206 = vld [vmem:[#allocation9 + $0x8] sm:$0xff]
    %v207 = vld [vmem:[#allocation9 + $0x10] sm:$0xff]
    %v208 = vld [vmem:[#allocation9 + $0x18] sm:$0xff]
    %v209 = vld [vmem:[#allocation9 + $0x20] sm:$0xff]
    %v210 = vld [vmem:[#allocation9 + $0x28] sm:$0xff]
    %v211 = vld [vmem:[#allocation9 + $0x30] sm:$0xff]
    %v212 = vld [vmem:[#allocation9 + $0x38] sm:$0xff]
    %v213 = vld [vmem:[#allocation9 + $0x40] sm:$0xff]
    %v214 = vld [vmem:[#allocation9 + $0x48] sm:$0xff]
    %v215 = vld [vmem:[#allocation9 + $0x50] sm:$0xff]
    %v216 = vld [vmem:[#allocation9 + $0x58] sm:$0xff]
    %v217 = vld [vmem:[#allocation9 + $0x60] sm:$0xff]
    %v218 = vld [vmem:[#allocation9 + $0x68] sm:$0xff]
    %v219 = vld [vmem:[#allocation9 + $0x70] sm:$0xff]
    %v220 = vld [vmem:[#allocation9 + $0x78] sm:$0xff]
    %v221 = vld [vmem:[#allocation9 + $0x80] sm:$0xff]
    %v222 = vld [vmem:[#allocation9 + $0x88] sm:$0xff]
    %v223 = vld [vmem:[#allocation9 + $0x90] sm:$0xff]
    %v224 = vld [vmem:[#allocation9 + $0x98] sm:$0xff]
    %v225 = vld [vmem:[#allocation9 + $0xa0] sm:$0xff]
    %v226 = vld [vmem:[#allocation9 + $0xa8] sm:$0xff]
    %v227 = vld [vmem:[#allocation9 + $0xb0] sm:$0xff]
    %v228 = vld [vmem:[#allocation9 + $0xb8] sm:$0xff]
    %v229 = vld [vmem:[#allocation9 + $0xc0] sm:$0xff]
    %v230 = vld [vmem:[#allocation9 + $0xc8] sm:$0xff]
    %v231 = vld [vmem:[#allocation9 + $0xd0] sm:$0xff]
    %v232 = vld [vmem:[#allocation9 + $0xd8] sm:$0xff]
    %v233 = vld [vmem:[#allocation9 + $0xe0] sm:$0xff]
    %v234 = vld [vmem:[#allocation9 + $0xe8] sm:$0xff]
    %v235 = vld [vmem:[#allocation9 + $0xf0] sm:$0xff]
    %v236 = vld [vmem:[#allocation9 + $0xf8] sm:$0xff]
    %v237 = vld [vmem:[#allocation9 + $0x100] sm:$0xff]
    %v238 = vld [vmem:[#allocation9 + $0x108] sm:$0xff]
    %v239 = vld [vmem:[#allocation9 + $0x110] sm:$0xff]
    %v240 = vld [vmem:[#allocation9 + $0x118] sm:$0xff]
    %v241 = vld [vmem:[#allocation9 + $0x120] sm:$0xff]
    %v242 = vld [vmem:[#allocation9 + $0x128] sm:$0xff]
    %v243 = vld [vmem:[#allocation9 + $0x130] sm:$0xff]
    %v244 = vld [vmem:[#allocation9 + $0x138] sm:$0xff]
    %v245 = vld [vmem:[#allocation9 + $0x140] sm:$0xff]
    %v246 = vld [vmem:[#allocation9 + $0x148] sm:$0xff]
    %v247 = vld [vmem:[#allocation9 + $0x150] sm:$0xff]
    %v248 = vld [vmem:[#allocation9 + $0x158] sm:$0xff]
    %v249 = vld [vmem:[#allocation9 + $0x160] sm:$0xff]
    %v250 = vld [vmem:[#allocation9 + $0x168] sm:$0xff]
    %v251 = vld [vmem:[#allocation9 + $0x170] sm:$0xff]
    %v252 = vld [vmem:[#allocation9 + $0x178] sm:$0xff]
    %v253 = vld [vmem:[#allocation9 + $0x180] sm:$0xff]
    %v254 = vld [vmem:[#allocation9 + $0x188] sm:$0xff]
    %v255 = vld [vmem:[#allocation9 + $0x190] sm:$0xff]
    %v256 = vld [vmem:[#allocation9 + $0x198] sm:$0xff]
    %v257 = vld [vmem:[#allocation9 + $0x1a0] sm:$0xff]
    %v258 = vld [vmem:[#allocation9 + $0x1a8] sm:$0xff]
    %v259 = vld [vmem:[#allocation9 + $0x1b0] sm:$0xff]
    %v260 = vld [vmem:[#allocation9 + $0x1b8] sm:$0xff]
    %v261 = vld [vmem:[#allocation9 + $0x1c0] sm:$0xff]
    %v262 = vld [vmem:[#allocation9 + $0x1c8] sm:$0xff]
    %v263 = vld [vmem:[#allocation9 + $0x1d0] sm:$0xff]
    %v264 = vld [vmem:[#allocation9 + $0x1d8] sm:$0xff]
    %v265 = vld [vmem:[#allocation9 + $0x1e0] sm:$0xff]
    %v266 = vld [vmem:[#allocation9 + $0x1e8] sm:$0xff]
    %v267 = vld [vmem:[#allocation9 + $0x1f0] sm:$0xff]
    %v268 = vld [vmem:[#allocation9 + $0x1f8] sm:$0xff]
    %v269 = vld [vmem:[#allocation9 + $0x200] sm:$0xff]
    %v270 = vld [vmem:[#allocation9 + $0x208] sm:$0xff]
    %v271 = vld [vmem:[#allocation9 + $0x210] sm:$0xff]
    %v272 = vld [vmem:[#allocation9 + $0x218] sm:$0xff]
    %v273 = vld [vmem:[#allocation9 + $0x220] sm:$0xff]
    %v274 = vld [vmem:[#allocation9 + $0x228] sm:$0xff]
    %v275 = vld [vmem:[#allocation9 + $0x230] sm:$0xff]
    %v276 = vld [vmem:[#allocation9 + $0x238] sm:$0xff]
    %v277 = vld [vmem:[#allocation9 + $0x240] sm:$0xff]
    %v278 = vld [vmem:[#allocation9 + $0x248] sm:$0xff]
    %v279 = vld [vmem:[#allocation9 + $0x250] sm:$0xff]
    %v280 = vld [vmem:[#allocation9 + $0x258] sm:$0xff]
    %v281 = vld [vmem:[#allocation9 + $0x260] sm:$0xff]
    %v282 = vld [vmem:[#allocation9 + $0x268] sm:$0xff]
    %v283 = vld [vmem:[#allocation9 + $0x270] sm:$0xff]
    %v284 = vld [vmem:[#allocation9 + $0x278] sm:$0xff]
    %v285 = vld [vmem:[#allocation9 + $0x280] sm:$0xff]
    %v286 = vld [vmem:[#allocation9 + $0x288] sm:$0xff]
    %v287 = vld [vmem:[#allocation9 + $0x290] sm:$0xff]
    %v288 = vld [vmem:[#allocation9 + $0x298] sm:$0xff]
    %v289 = vld [vmem:[#allocation9 + $0x2a0] sm:$0xff]
    %v290 = vld [vmem:[#allocation9 + $0x2a8] sm:$0xff]
    %v291 = vld [vmem:[#allocation9 + $0x2b0] sm:$0xff]
    %v292 = vld [vmem:[#allocation9 + $0x2b8] sm:$0xff]
    %v293 = vld [vmem:[#allocation9 + $0x2c0] sm:$0xff]
    %v294 = vld [vmem:[#allocation9 + $0x2c8] sm:$0xff]
    %v295 = vld [vmem:[#allocation9 + $0x2d0] sm:$0xff]
    %v296 = vld [vmem:[#allocation9 + $0x2d8] sm:$0xff]
    %v297 = vld [vmem:[#allocation9 + $0x2e0] sm:$0xff]
    %v298 = vld [vmem:[#allocation9 + $0x2e8] sm:$0xff]
    %v299 = vld [vmem:[#allocation9 + $0x2f0] sm:$0xff]
    %v300 = vld [vmem:[#allocation9 + $0x2f8] sm:$0xff]
    %v301 = vld [vmem:[#allocation9 + $0x300] sm:$0xff]
    %v302 = vld [vmem:[#allocation9 + $0x308] sm:$0xff]
    %v303 = vld [vmem:[#allocation9 + $0x310] sm:$0xff]
    %v304 = vld [vmem:[#allocation9 + $0x318] sm:$0xff]
    %v305 = vld [vmem:[#allocation9 + $0x320] sm:$0xff]
    %v306 = vld [vmem:[#allocation9 + $0x328] sm:$0xff]
    %v307 = vld [vmem:[#allocation9 + $0x330] sm:$0xff]
    %v308 = vld [vmem:[#allocation9 + $0x338] sm:$0xff]
    %v309 = vld [vmem:[#allocation9 + $0x340] sm:$0xff]
    %v310 = vld [vmem:[#allocation9 + $0x348] sm:$0xff]
    %v311 = vld [vmem:[#allocation9 + $0x350] sm:$0xff]
    %v312 = vld [vmem:[#allocation9 + $0x358] sm:$0xff]
    %v313 = vld [vmem:[#allocation9 + $0x360] sm:$0xff]
    %v314 = vld [vmem:[#allocation9 + $0x368] sm:$0xff]
    %v315 = vld [vmem:[#allocation9 + $0x370] sm:$0xff]
    %v316 = vld [vmem:[#allocation9 + $0x378] sm:$0xff]
    %v317 = vld [vmem:[#allocation9 + $0x380] sm:$0xff]
    %v318 = vld [vmem:[#allocation9 + $0x388] sm:$0xff]
    %v319 = vld [vmem:[#allocation9 + $0x390] sm:$0xff]
    %v320 = vld [vmem:[#allocation9 + $0x398] sm:$0xff]
    %v321 = vld [vmem:[#allocation9 + $0x3a0] sm:$0xff]
    %v322 = vld [vmem:[#allocation9 + $0x3a8] sm:$0xff]
    %v323 = vld [vmem:[#allocation9 + $0x3b0] sm:$0xff]
    %v324 = vld [vmem:[#allocation9 + $0x3b8] sm:$0xff]
    %v325 = vld [vmem:[#allocation9 + $0x3c0] sm:$0xff]
    %v326 = vld [vmem:[#allocation9 + $0x3c8] sm:$0xff]
    %v327 = vld [vmem:[#allocation9 + $0x3d0] sm:$0xff]
    %v328 = vld [vmem:[#allocation9 + $0x3d8] sm:$0xff]
    %v329 = vld [vmem:[#allocation9 + $0x3e0] sm:$0xff]
    %v330 = vld [vmem:[#allocation9 + $0x3e8] sm:$0xff]
    %v331 = vld [vmem:[#allocation9 + $0x3f0] sm:$0xff]
    %v332 = vld [vmem:[#allocation9 + $0x3f8] sm:$0xff]
    %v461 = vunpack.c.l.b16 %v205
    %v462 = vunpack.c.h.b16 %v205
    %v463 = vunpack.c.l.b16 %v206
    %v464 = vunpack.c.h.b16 %v206
    %v465 = vunpack.c.l.b16 %v207
    %v466 = vunpack.c.h.b16 %v207
    %v467 = vunpack.c.l.b16 %v208
    %v468 = vunpack.c.h.b16 %v208
    %v469 = vunpack.c.l.b16 %v209
    %v470 = vunpack.c.h.b16 %v209
    %v471 = vunpack.c.l.b16 %v210
    %v472 = vunpack.c.h.b16 %v210
    %v473 = vunpack.c.l.b16 %v211
    %v474 = vunpack.c.h.b16 %v211
    %v475 = vunpack.c.l.b16 %v212
    %v476 = vunpack.c.h.b16 %v212
    %v477 = vunpack.c.l.b16 %v213
    %v478 = vunpack.c.h.b16 %v213
    %v479 = vunpack.c.l.b16 %v214
    %v480 = vunpack.c.h.b16 %v214
    %v481 = vunpack.c.l.b16 %v215
    %v482 = vunpack.c.h.b16 %v215
    %v483 = vunpack.c.l.b16 %v216
    %v484 = vunpack.c.h.b16 %v216
    %v485 = vunpack.c.l.b16 %v217
    %v486 = vunpack.c.h.b16 %v217
    %v487 = vunpack.c.l.b16 %v218
    %v488 = vunpack.c.h.b16 %v218
    %v489 = vunpack.c.l.b16 %v219
    %v490 = vunpack.c.h.b16 %v219
    %v491 = vunpack.c.l.b16 %v220
    %v492 = vunpack.c.h.b16 %v220
    %v493 = vunpack.c.l.b16 %v221
    %v494 = vunpack.c.h.b16 %v221
    %v495 = vunpack.c.l.b16 %v222
    %v496 = vunpack.c.h.b16 %v222
    %v497 = vunpack.c.l.b16 %v223
    %v498 = vunpack.c.h.b16 %v223
    %v499 = vunpack.c.l.b16 %v224
    %v500 = vunpack.c.h.b16 %v224
    %v501 = vunpack.c.l.b16 %v225
    %v502 = vunpack.c.h.b16 %v225
    %v503 = vunpack.c.l.b16 %v226
    %v504 = vunpack.c.h.b16 %v226
    %v505 = vunpack.c.l.b16 %v227
    %v506 = vunpack.c.h.b16 %v227
    %v507 = vunpack.c.l.b16 %v228
    %v508 = vunpack.c.h.b16 %v228
    %v509 = vunpack.c.l.b16 %v229
    %v510 = vunpack.c.h.b16 %v229
    %v511 = vunpack.c.l.b16 %v230
    %v512 = vunpack.c.h.b16 %v230
    %v513 = vunpack.c.l.b16 %v231
    %v514 = vunpack.c.h.b16 %v231
    %v515 = vunpack.c.l.b16 %v232
    %v516 = vunpack.c.h.b16 %v232
    %v517 = vunpack.c.l.b16 %v233
    %v518 = vunpack.c.h.b16 %v233
    %v519 = vunpack.c.l.b16 %v234
    %v520 = vunpack.c.h.b16 %v234
    %v521 = vunpack.c.l.b16 %v235
    %v522 = vunpack.c.h.b16 %v235
    %v523 = vunpack.c.l.b16 %v236
    %v524 = vunpack.c.h.b16 %v236
    %v525 = vunpack.c.l.b16 %v237
    %v526 = vunpack.c.h.b16 %v237
    %v527 = vunpack.c.l.b16 %v238
    %v528 = vunpack.c.h.b16 %v238
    %v529 = vunpack.c.l.b16 %v239
    %v530 = vunpack.c.h.b16 %v239
    %v531 = vunpack.c.l.b16 %v240
    %v532 = vunpack.c.h.b16 %v240
    %v533 = vunpack.c.l.b16 %v241
    %v534 = vunpack.c.h.b16 %v241
    %v535 = vunpack.c.l.b16 %v242
    %v536 = vunpack.c.h.b16 %v242
    %v537 = vunpack.c.l.b16 %v243
    %v538 = vunpack.c.h.b16 %v243
    %v539 = vunpack.c.l.b16 %v244
    %v540 = vunpack.c.h.b16 %v244
    %v541 = vunpack.c.l.b16 %v245
    %v542 = vunpack.c.h.b16 %v245
    %v543 = vunpack.c.l.b16 %v246
    %v544 = vunpack.c.h.b16 %v246
    %v545 = vunpack.c.l.b16 %v247
    %v546 = vunpack.c.h.b16 %v247
    %v547 = vunpack.c.l.b16 %v248
    %v548 = vunpack.c.h.b16 %v248
    %v549 = vunpack.c.l.b16 %v249
    %v550 = vunpack.c.h.b16 %v249
    %v551 = vunpack.c.l.b16 %v250
    %v552 = vunpack.c.h.b16 %v250
    %v553 = vunpack.c.l.b16 %v251
    %v554 = vunpack.c.h.b16 %v251
    %v555 = vunpack.c.l.b16 %v252
    %v556 = vunpack.c.h.b16 %v252
    %v557 = vunpack.c.l.b16 %v253
    %v558 = vunpack.c.h.b16 %v253
    %v559 = vunpack.c.l.b16 %v254
    %v560 = vunpack.c.h.b16 %v254
    %v561 = vunpack.c.l.b16 %v255
    %v562 = vunpack.c.h.b16 %v255
    %v563 = vunpack.c.l.b16 %v256
    %v564 = vunpack.c.h.b16 %v256
    %v565 = vunpack.c.l.b16 %v257
    %v566 = vunpack.c.h.b16 %v257
    %v567 = vunpack.c.l.b16 %v258
    %v568 = vunpack.c.h.b16 %v258
    %v569 = vunpack.c.l.b16 %v259
    %v570 = vunpack.c.h.b16 %v259
    %v571 = vunpack.c.l.b16 %v260
    %v572 = vunpack.c.h.b16 %v260
    %v573 = vunpack.c.l.b16 %v261
    %v574 = vunpack.c.h.b16 %v261
    %v575 = vunpack.c.l.b16 %v262
    %v576 = vunpack.c.h.b16 %v262
    %v577 = vunpack.c.l.b16 %v263
    %v578 = vunpack.c.h.b16 %v263
    %v579 = vunpack.c.l.b16 %v264
    %v580 = vunpack.c.h.b16 %v264
    %v581 = vunpack.c.l.b16 %v265
    %v582 = vunpack.c.h.b16 %v265
    %v583 = vunpack.c.l.b16 %v266
    %v584 = vunpack.c.h.b16 %v266
    %v585 = vunpack.c.l.b16 %v267
    %v586 = vunpack.c.h.b16 %v267
    %v587 = vunpack.c.l.b16 %v268
    %v588 = vunpack.c.h.b16 %v268
    %v589 = vunpack.c.l.b16 %v269
    %v590 = vunpack.c.h.b16 %v269
    %v591 = vunpack.c.l.b16 %v270
    %v592 = vunpack.c.h.b16 %v270
    %v593 = vunpack.c.l.b16 %v271
    %v594 = vunpack.c.h.b16 %v271
    %v595 = vunpack.c.l.b16 %v272
    %v596 = vunpack.c.h.b16 %v272
    %v597 = vunpack.c.l.b16 %v273
    %v598 = vunpack.c.h.b16 %v273
    %v599 = vunpack.c.l.b16 %v274
    %v600 = vunpack.c.h.b16 %v274
    %v601 = vunpack.c.l.b16 %v275
    %v602 = vunpack.c.h.b16 %v275
    %v603 = vunpack.c.l.b16 %v276
    %v604 = vunpack.c.h.b16 %v276
    %v605 = vunpack.c.l.b16 %v277
    %v606 = vunpack.c.h.b16 %v277
    %v607 = vunpack.c.l.b16 %v278
    %v608 = vunpack.c.h.b16 %v278
    %v609 = vunpack.c.l.b16 %v279
    %v610 = vunpack.c.h.b16 %v279
    %v611 = vunpack.c.l.b16 %v280
    %v612 = vunpack.c.h.b16 %v280
    %v613 = vunpack.c.l.b16 %v281
    %v614 = vunpack.c.h.b16 %v281
    %v615 = vunpack.c.l.b16 %v282
    %v616 = vunpack.c.h.b16 %v282
    %v617 = vunpack.c.l.b16 %v283
    %v618 = vunpack.c.h.b16 %v283
    %v619 = vunpack.c.l.b16 %v284
    %v620 = vunpack.c.h.b16 %v284
    %v621 = vunpack.c.l.b16 %v285
    %v622 = vunpack.c.h.b16 %v285
    %v623 = vunpack.c.l.b16 %v286
    %v624 = vunpack.c.h.b16 %v286
    %v625 = vunpack.c.l.b16 %v287
    %v626 = vunpack.c.h.b16 %v287
    %v627 = vunpack.c.l.b16 %v288
    %v628 = vunpack.c.h.b16 %v288
    %v629 = vunpack.c.l.b16 %v289
    %v630 = vunpack.c.h.b16 %v289
    %v631 = vunpack.c.l.b16 %v290
    %v632 = vunpack.c.h.b16 %v290
    %v633 = vunpack.c.l.b16 %v291
    %v634 = vunpack.c.h.b16 %v291
    %v635 = vunpack.c.l.b16 %v292
    %v636 = vunpack.c.h.b16 %v292
    %v637 = vunpack.c.l.b16 %v293
    %v638 = vunpack.c.h.b16 %v293
    %v639 = vunpack.c.l.b16 %v294
    %v640 = vunpack.c.h.b16 %v294
    %v641 = vunpack.c.l.b16 %v295
    %v642 = vunpack.c.h.b16 %v295
    %v643 = vunpack.c.l.b16 %v296
    %v644 = vunpack.c.h.b16 %v296
    %v645 = vunpack.c.l.b16 %v297
    %v646 = vunpack.c.h.b16 %v297
    %v647 = vunpack.c.l.b16 %v298
    %v648 = vunpack.c.h.b16 %v298
    %v649 = vunpack.c.l.b16 %v299
    %v650 = vunpack.c.h.b16 %v299
    %v651 = vunpack.c.l.b16 %v300
    %v652 = vunpack.c.h.b16 %v300
    %v653 = vunpack.c.l.b16 %v301
    %v654 = vunpack.c.h.b16 %v301
    %v655 = vunpack.c.l.b16 %v302
    %v656 = vunpack.c.h.b16 %v302
    %v657 = vunpack.c.l.b16 %v303
    %v658 = vunpack.c.h.b16 %v303
    %v659 = vunpack.c.l.b16 %v304
    %v660 = vunpack.c.h.b16 %v304
    %v661 = vunpack.c.l.b16 %v305
    %v662 = vunpack.c.h.b16 %v305
    %v663 = vunpack.c.l.b16 %v306
    %v664 = vunpack.c.h.b16 %v306
    %v665 = vunpack.c.l.b16 %v307
    %v666 = vunpack.c.h.b16 %v307
    %v667 = vunpack.c.l.b16 %v308
    %v668 = vunpack.c.h.b16 %v308
    %v669 = vunpack.c.l.b16 %v309
    %v670 = vunpack.c.h.b16 %v309
    %v671 = vunpack.c.l.b16 %v310
    %v672 = vunpack.c.h.b16 %v310
    %v673 = vunpack.c.l.b16 %v311
    %v674 = vunpack.c.h.b16 %v311
    %v675 = vunpack.c.l.b16 %v312
    %v676 = vunpack.c.h.b16 %v312
    %v677 = vunpack.c.l.b16 %v313
    %v678 = vunpack.c.h.b16 %v313
    %v679 = vunpack.c.l.b16 %v314
    %v680 = vunpack.c.h.b16 %v314
    %v681 = vunpack.c.l.b16 %v315
    %v682 = vunpack.c.h.b16 %v315
    %v683 = vunpack.c.l.b16 %v316
    %v684 = vunpack.c.h.b16 %v316
    %v685 = vunpack.c.l.b16 %v317
    %v686 = vunpack.c.h.b16 %v317
    %v687 = vunpack.c.l.b16 %v318
    %v688 = vunpack.c.h.b16 %v318
    %v689 = vunpack.c.l.b16 %v319
    %v690 = vunpack.c.h.b16 %v319
    %v691 = vunpack.c.l.b16 %v320
    %v692 = vunpack.c.h.b16 %v320
    %v693 = vunpack.c.l.b16 %v321
    %v694 = vunpack.c.h.b16 %v321
    %v695 = vunpack.c.l.b16 %v322
    %v696 = vunpack.c.h.b16 %v322
    %v697 = vunpack.c.l.b16 %v323
    %v698 = vunpack.c.h.b16 %v323
    %v699 = vunpack.c.l.b16 %v324
    %v700 = vunpack.c.h.b16 %v324
    %v701 = vunpack.c.l.b16 %v325
    %v702 = vunpack.c.h.b16 %v325
    %v703 = vunpack.c.l.b16 %v326
    %v704 = vunpack.c.h.b16 %v326
    %v705 = vunpack.c.l.b16 %v327
    %v706 = vunpack.c.h.b16 %v327
    %v707 = vunpack.c.l.b16 %v328
    %v708 = vunpack.c.h.b16 %v328
    %v709 = vunpack.c.l.b16 %v329
    %v710 = vunpack.c.h.b16 %v329
    %v711 = vunpack.c.l.b16 %v330
    %v712 = vunpack.c.h.b16 %v330
    %v713 = vunpack.c.l.b16 %v331
    %v714 = vunpack.c.h.b16 %v331
    %v715 = vunpack.c.l.b16 %v332
    %v716 = vunpack.c.h.b16 %v332
    %v717 = vpack.c.b16 %v469, %v461
    %v718 = vpack.c.b16 %v470, %v462
    %v719 = vpack.c.b16 %v471, %v463
    %v720 = vpack.c.b16 %v472, %v464
    %v721 = vpack.c.b16 %v473, %v465
    %v722 = vpack.c.b16 %v474, %v466
    %v723 = vpack.c.b16 %v475, %v467
    %v724 = vpack.c.b16 %v476, %v468
    %v725 = vpack.c.b16 %v485, %v477
    %v726 = vpack.c.b16 %v486, %v478
    %v727 = vpack.c.b16 %v487, %v479
    %v728 = vpack.c.b16 %v488, %v480
    %v729 = vpack.c.b16 %v489, %v481
    %v730 = vpack.c.b16 %v490, %v482
    %v731 = vpack.c.b16 %v491, %v483
    %v732 = vpack.c.b16 %v492, %v484
    %v733 = vpack.c.b16 %v501, %v493
    %v734 = vpack.c.b16 %v502, %v494
    %v735 = vpack.c.b16 %v503, %v495
    %v736 = vpack.c.b16 %v504, %v496
    %v737 = vpack.c.b16 %v505, %v497
    %v738 = vpack.c.b16 %v506, %v498
    %v739 = vpack.c.b16 %v507, %v499
    %v740 = vpack.c.b16 %v508, %v500
    %v741 = vpack.c.b16 %v517, %v509
    %v742 = vpack.c.b16 %v518, %v510
    %v743 = vpack.c.b16 %v519, %v511
    %v744 = vpack.c.b16 %v520, %v512
    %v745 = vpack.c.b16 %v521, %v513
    %v746 = vpack.c.b16 %v522, %v514
    %v747 = vpack.c.b16 %v523, %v515
    %v748 = vpack.c.b16 %v524, %v516
    %v749 = vpack.c.b16 %v533, %v525
    %v750 = vpack.c.b16 %v534, %v526
    %v751 = vpack.c.b16 %v535, %v527
    %v752 = vpack.c.b16 %v536, %v528
    %v753 = vpack.c.b16 %v537, %v529
    %v754 = vpack.c.b16 %v538, %v530
    %v755 = vpack.c.b16 %v539, %v531
    %v756 = vpack.c.b16 %v540, %v532
    %v757 = vpack.c.b16 %v549, %v541
    %v758 = vpack.c.b16 %v550, %v542
    %v759 = vpack.c.b16 %v551, %v543
    %v760 = vpack.c.b16 %v552, %v544
    %v761 = vpack.c.b16 %v553, %v545
    %v762 = vpack.c.b16 %v554, %v546
    %v763 = vpack.c.b16 %v555, %v547
    %v764 = vpack.c.b16 %v556, %v548
    %v765 = vpack.c.b16 %v565, %v557
    %v766 = vpack.c.b16 %v566, %v558
    %v767 = vpack.c.b16 %v567, %v559
    %v768 = vpack.c.b16 %v568, %v560
    %v769 = vpack.c.b16 %v569, %v561
    %v770 = vpack.c.b16 %v570, %v562
    %v771 = vpack.c.b16 %v571, %v563
    %v772 = vpack.c.b16 %v572, %v564
    %v773 = vpack.c.b16 %v581, %v573
    %v774 = vpack.c.b16 %v582, %v574
    %v775 = vpack.c.b16 %v583, %v575
    %v776 = vpack.c.b16 %v584, %v576
    %v777 = vpack.c.b16 %v585, %v577
    %v778 = vpack.c.b16 %v586, %v578
    %v779 = vpack.c.b16 %v587, %v579
    %v780 = vpack.c.b16 %v588, %v580
    %v781 = vpack.c.b16 %v597, %v589
    %v782 = vpack.c.b16 %v598, %v590
    %v783 = vpack.c.b16 %v599, %v591
    %v784 = vpack.c.b16 %v600, %v592
    %v785 = vpack.c.b16 %v601, %v593
    %v786 = vpack.c.b16 %v602, %v594
    %v787 = vpack.c.b16 %v603, %v595
    %v788 = vpack.c.b16 %v604, %v596
    %v789 = vpack.c.b16 %v613, %v605
    %v790 = vpack.c.b16 %v614, %v606
    %v791 = vpack.c.b16 %v615, %v607
    %v792 = vpack.c.b16 %v616, %v608
    %v793 = vpack.c.b16 %v617, %v609
    %v794 = vpack.c.b16 %v618, %v610
    %v795 = vpack.c.b16 %v619, %v611
    %v796 = vpack.c.b16 %v620, %v612
    %v797 = vpack.c.b16 %v629, %v621
    %v798 = vpack.c.b16 %v630, %v622
    %v799 = vpack.c.b16 %v631, %v623
    %v800 = vpack.c.b16 %v632, %v624
    %v801 = vpack.c.b16 %v633, %v625
    %v802 = vpack.c.b16 %v634, %v626
    %v803 = vpack.c.b16 %v635, %v627
    %v804 = vpack.c.b16 %v636, %v628
    %v805 = vpack.c.b16 %v645, %v637
    %v806 = vpack.c.b16 %v646, %v638
    %v807 = vpack.c.b16 %v647, %v639
    %v808 = vpack.c.b16 %v648, %v640
    %v809 = vpack.c.b16 %v649, %v641
    %v810 = vpack.c.b16 %v650, %v642
    %v811 = vpack.c.b16 %v651, %v643
    %v812 = vpack.c.b16 %v652, %v644
    %v813 = vpack.c.b16 %v661, %v653
    %v814 = vpack.c.b16 %v662, %v654
    %v815 = vpack.c.b16 %v663, %v655
    %v816 = vpack.c.b16 %v664, %v656
    %v817 = vpack.c.b16 %v665, %v657
    %v818 = vpack.c.b16 %v666, %v658
    %v819 = vpack.c.b16 %v667, %v659
    %v820 = vpack.c.b16 %v668, %v660
    %v821 = vpack.c.b16 %v677, %v669
    %v822 = vpack.c.b16 %v678, %v670
    %v823 = vpack.c.b16 %v679, %v671
    %v824 = vpack.c.b16 %v680, %v672
    %v825 = vpack.c.b16 %v681, %v673
    %v826 = vpack.c.b16 %v682, %v674
    %v827 = vpack.c.b16 %v683, %v675
    %v828 = vpack.c.b16 %v684, %v676
    %v829 = vpack.c.b16 %v693, %v685
    %v830 = vpack.c.b16 %v694, %v686
    %v831 = vpack.c.b16 %v695, %v687
    %v832 = vpack.c.b16 %v696, %v688
    %v833 = vpack.c.b16 %v697, %v689
    %v834 = vpack.c.b16 %v698, %v690
    %v835 = vpack.c.b16 %v699, %v691
    %v836 = vpack.c.b16 %v700, %v692
    %v837 = vpack.c.b16 %v709, %v701
    %v838 = vpack.c.b16 %v710, %v702
    %v839 = vpack.c.b16 %v711, %v703
    %v840 = vpack.c.b16 %v712, %v704
    %v841 = vpack.c.b16 %v713, %v705
    %v842 = vpack.c.b16 %v714, %v706
    %v843 = vpack.c.b16 %v715, %v707
    %v844 = vpack.c.b16 %v716, %v708
    %973 = vmatprep.subr.bf16.mxu0 %v718
    %974 = vmatpush1.bf16.msra.mxu0 %v717
    %975 = vmatprep.subr.bf16.mxu0 %v726
    %976 = vmatpush1.bf16.msra.mxu0 %v725
    %977 = vmatprep.subr.bf16.mxu0 %v734
    %978 = vmatpush1.bf16.msra.mxu0 %v733
    %979 = vmatprep.subr.bf16.mxu0 %v742
    %980 = vmatpush1.bf16.msra.mxu0 %v741
    %981 = vmatprep.subr.bf16.mxu0 %v750
    %982 = vmatpush1.bf16.msra.mxu0 %v749
    %983 = vmatprep.subr.bf16.mxu0 %v758
    %984 = vmatpush1.bf16.msra.mxu0 %v757
    %985 = vmatprep.subr.bf16.mxu0 %v766
    %986 = vmatpush1.bf16.msra.mxu0 %v765
    %987 = vmatprep.subr.bf16.mxu0 %v774
    %988 = vmatpush1.bf16.msra.mxu0 %v773
    %989 = vmatprep.subr.bf16.mxu0 %v782
    %990 = vmatpush1.bf16.msra.mxu0 %v781
    %991 = vmatprep.subr.bf16.mxu0 %v790
    %992 = vmatpush1.bf16.msra.mxu0 %v789
    %993 = vmatprep.subr.bf16.mxu0 %v798
    %994 = vmatpush1.bf16.msra.mxu0 %v797
    %995 = vmatprep.subr.bf16.mxu0 %v806
    %996 = vmatpush1.bf16.msra.mxu0 %v805
    %997 = vmatprep.subr.bf16.mxu0 %v814
    %998 = vmatpush1.bf16.msra.mxu0 %v813
    %999 = vmatprep.subr.bf16.mxu0 %v822
    %1000 = vmatpush1.bf16.msra.mxu0 %v821
    %1001 = vmatprep.subr.bf16.mxu0 %v830
    %1002 = vmatpush1.bf16.msra.mxu0 %v829
    %1003 = vmatprep.subr.bf16.mxu0 %v838
    %1004 = vmatpush1.bf16.msra.mxu0 %v837
    %1005 = vmatprep.mubr.bf16.mxu0 %v204
    %1006 = vmatmul.mubr.bf16.gmra.mrb[0].mxu0 %v203
    %v1007 = vpop.f32.mrb[0].mxu0
    %v1008 = vadd.f32 0.0, %v1007
    %v1009 = vpop.f32.mrb[0].mxu0
    %v1010 = vadd.f32 0.0, %v1009
    %v1011 = vpop.f32.mrb[0].mxu0
    %v1012 = vadd.f32 0.0, %v1011
    %v1013 = vpop.f32.mrb[0].mxu0
    %v1014 = vadd.f32 0.0, %v1013
    %1015 = vdwg.mxu0
    %1016 = vmatprep.subr.bf16.mxu0 %v720
    %1017 = vmatpush1.bf16.msra.mxu0 %v719
    %1018 = vmatprep.subr.bf16.mxu0 %v728
    %1019 = vmatpush1.bf16.msra.mxu0 %v727
    %1020 = vmatprep.subr.bf16.mxu0 %v736
    %1021 = vmatpush1.bf16.msra.mxu0 %v735
    %1022 = vmatprep.subr.bf16.mxu0 %v744
    %1023 = vmatpush1.bf16.msra.mxu0 %v743
    %1024 = vmatprep.subr.bf16.mxu0 %v752
    %1025 = vmatpush1.bf16.msra.mxu0 %v751
    %1026 = vmatprep.subr.bf16.mxu0 %v760
    %1027 = vmatpush1.bf16.msra.mxu0 %v759
    %1028 = vmatprep.subr.bf16.mxu0 %v768
    %1029 = vmatpush1.bf16.msra.mxu0 %v767
    %1030 = vmatprep.subr.bf16.mxu0 %v776
    %1031 = vmatpush1.bf16.msra.mxu0 %v775
    %1032 = vmatprep.subr.bf16.mxu0 %v784
    %1033 = vmatpush1.bf16.msra.mxu0 %v783
    %1034 = vmatprep.subr.bf16.mxu0 %v792
    %1035 = vmatpush1.bf16.msra.mxu0 %v791
    %1036 = vmatprep.subr.bf16.mxu0 %v800
    %1037 = vmatpush1.bf16.msra.mxu0 %v799
    %1038 = vmatprep.subr.bf16.mxu0 %v808
    %1039 = vmatpush1.bf16.msra.mxu0 %v807
    %1040 = vmatprep.subr.bf16.mxu0 %v816
    %1041 = vmatpush1.bf16.msra.mxu0 %v815
    %1042 = vmatprep.subr.bf16.mxu0 %v824
    %1043 = vmatpush1.bf16.msra.mxu0 %v823
    %1044 = vmatprep.subr.bf16.mxu0 %v832
    %1045 = vmatpush1.bf16.msra.mxu0 %v831
    %1046 = vmatprep.subr.bf16.mxu0 %v840
    %1047 = vmatpush1.bf16.msra.mxu0 %v839
    %1048 = vmatprep.mubr.bf16.mxu0 %v204
    %1049 = vmatmul.mubr.bf16.gmra.mrb[0].mxu0 %v203
    %v1050 = vpop.f32.mrb[0].mxu0
    %v1051 = vadd.f32 0.0, %v1050
    %v1052 = vpop.f32.mrb[0].mxu0
    %v1053 = vadd.f32 0.0, %v1052
    %v1054 = vpop.f32.mrb[0].mxu0
    %v1055 = vadd.f32 0.0, %v1054
    %v1056 = vpop.f32.mrb[0].mxu0
    %v1057 = vadd.f32 0.0, %v1056
    %1058 = vdwg.mxu0
    %1059 = vmatprep.subr.bf16.mxu0 %v722
    %1060 = vmatpush1.bf16.msra.mxu0 %v721
    %1061 = vmatprep.subr.bf16.mxu0 %v730
    %1062 = vmatpush1.bf16.msra.mxu0 %v729
    %1063 = vmatprep.subr.bf16.mxu0 %v738
    %1064 = vmatpush1.bf16.msra.mxu0 %v737
    %1065 = vmatprep.subr.bf16.mxu0 %v746
    %1066 = vmatpush1.bf16.msra.mxu0 %v745
    %1067 = vmatprep.subr.bf16.mxu0 %v754
    %1068 = vmatpush1.bf16.msra.mxu0 %v753
    %1069 = vmatprep.subr.bf16.mxu0 %v762
    %1070 = vmatpush1.bf16.msra.mxu0 %v761
    %1071 = vmatprep.subr.bf16.mxu0 %v770
    %1072 = vmatpush1.bf16.msra.mxu0 %v769
    %1073 = vmatprep.subr.bf16.mxu0 %v778
    %1074 = vmatpush1.bf16.msra.mxu0 %v777
    %1075 = vmatprep.subr.bf16.mxu0 %v786
    %1076 = vmatpush1.bf16.msra.mxu0 %v785
    %1077 = vmatprep.subr.bf16.mxu0 %v794
    %1078 = vmatpush1.bf16.msra.mxu0 %v793
    %1079 = vmatprep.subr.bf16.mxu0 %v802
    %1080 = vmatpush1.bf16.msra.mxu0 %v801
    %1081 = vmatprep.subr.bf16.mxu0 %v810
    %1082 = vmatpush1.bf16.msra.mxu0 %v809
    %1083 = vmatprep.subr.bf16.mxu0 %v818
    %1084 = vmatpush1.bf16.msra.mxu0 %v817
    %1085 = vmatprep.subr.bf16.mxu0 %v826
    %1086 = vmatpush1.bf16.msra.mxu0 %v825
    %1087 = vmatprep.subr.bf16.mxu0 %v834
    %1088 = vmatpush1.bf16.msra.mxu0 %v833
    %1089 = vmatprep.subr.bf16.mxu0 %v842
    %1090 = vmatpush1.bf16.msra.mxu0 %v841
    %1091 = vmatprep.mubr.bf16.mxu0 %v204
    %1092 = vmatmul.mubr.bf16.gmra.mrb[0].mxu0 %v203
    %v1093 = vpop.f32.mrb[0].mxu0
    %v1094 = vadd.f32 0.0, %v1093
    %v1095 = vpop.f32.mrb[0].mxu0
    %v1096 = vadd.f32 0.0, %v1095
    %v1097 = vpop.f32.mrb[0].mxu0
    %v1098 = vadd.f32 0.0, %v1097
    %v1099 = vpop.f32.mrb[0].mxu0
    %v1100 = vadd.f32 0.0, %v1099
    %1101 = vdwg.mxu0
    %1102 = vmatprep.subr.bf16.mxu0 %v724
    %1103 = vmatpush1.bf16.msra.mxu0 %v723
    %1104 = vmatprep.subr.bf16.mxu0 %v732
    %1105 = vmatpush1.bf16.msra.mxu0 %v731
    %1106 = vmatprep.subr.bf16.mxu0 %v740
    %1107 = vmatpush1.bf16.msra.mxu0 %v739
    %1108 = vmatprep.subr.bf16.mxu0 %v748
    %1109 = vmatpush1.bf16.msra.mxu0 %v747
    %1110 = vmatprep.subr.bf16.mxu0 %v756
    %1111 = vmatpush1.bf16.msra.mxu0 %v755
    %1112 = vmatprep.subr.bf16.mxu0 %v764
    %1113 = vmatpush1.bf16.msra.mxu0 %v763
    %1114 = vmatprep.subr.bf16.mxu0 %v772
    %1115 = vmatpush1.bf16.msra.mxu0 %v771
    %1116 = vmatprep.subr.bf16.mxu0 %v780
    %1117 = vmatpush1.bf16.msra.mxu0 %v779
    %1118 = vmatprep.subr.bf16.mxu0 %v788
    %1119 = vmatpush1.bf16.msra.mxu0 %v787
    %1120 = vmatprep.subr.bf16.mxu0 %v796
    %1121 = vmatpush1.bf16.msra.mxu0 %v795
    %1122 = vmatprep.subr.bf16.mxu0 %v804
    %1123 = vmatpush1.bf16.msra.mxu0 %v803
    %1124 = vmatprep.subr.bf16.mxu0 %v812
    %1125 = vmatpush1.bf16.msra.mxu0 %v811
    %1126 = vmatprep.subr.bf16.mxu0 %v820
    %1127 = vmatpush1.bf16.msra.mxu0 %v819
    %1128 = vmatprep.subr.bf16.mxu0 %v828
    %1129 = vmatpush1.bf16.msra.mxu0 %v827
    %1130 = vmatprep.subr.bf16.mxu0 %v836
    %1131 = vmatpush1.bf16.msra.mxu0 %v835
    %1132 = vmatprep.subr.bf16.mxu0 %v844
    %1133 = vmatpush1.bf16.msra.mxu0 %v843
    %1134 = vmatprep.mubr.bf16.mxu0 %v204
    %1135 = vmatmul.mubr.bf16.gmra.mrb[0].mxu0 %v203
    %v1136 = vpop.f32.mrb[0].mxu0
    %v1137 = vadd.f32 0.0, %v1136
    %v1138 = vpop.f32.mrb[0].mxu0
    %v1139 = vadd.f32 0.0, %v1138
    %v1140 = vpop.f32.mrb[0].mxu0
    %v1141 = vadd.f32 0.0, %v1140
    %v1142 = vpop.f32.mrb[0].mxu0
    %v1143 = vadd.f32 0.0, %v1142
    %1144 = vdwg.mxu0
    %1145 = vst [vmem:[#allocation11] sm:$0xff] %v1008
    %1146 = vst [vmem:[#allocation11 + $0x8] sm:$0xff] %v1010
    %1147 = vst [vmem:[#allocation11 + $0x10] sm:$0xff] %v1051
    %1148 = vst [vmem:[#allocation11 + $0x18] sm:$0xff] %v1053
    %1149 = vst [vmem:[#allocation11 + $0x20] sm:$0xff] %v1094
    %1150 = vst [vmem:[#allocation11 + $0x28] sm:$0xff] %v1096
    %1151 = vst [vmem:[#allocation11 + $0x30] sm:$0xff] %v1137
    %1152 = vst [vmem:[#allocation11 + $0x38] sm:$0xff] %v1139
    %s1153 = scalar_lea.vmem [#allocation11], 64
    %1154 = vst [vmem:[%s1153] sm:$0xff] %v1012
    %1155 = vst [vmem:[%s1153 + $0x8] sm:$0xff] %v1014
    %1156 = vst [vmem:[%s1153 + $0x10] sm:$0xff] %v1055
    %1157 = vst [vmem:[%s1153 + $0x18] sm:$0xff] %v1057
    %1158 = vst [vmem:[%s1153 + $0x20] sm:$0xff] %v1098
    %1159 = vst [vmem:[%s1153 + $0x28] sm:$0xff] %v1100
    %1160 = vst [vmem:[%s1153 + $0x30] sm:$0xff] %v1141
    %1161 = vst [vmem:[%s1153 + $0x38] sm:$0xff] %v1143
    // Predicated region
    $region34: #{tpu_custom_call.1} parent=1 // pred_check
      _
    $region35: #{tpu_custom_call.1} parent=1 // pred_check_branch
      %1163 = sbr.rel (0) target = $region37
    $region36: #{tpu_custom_call.1} parent=1 // pred_region
      %s1165 = ssub.s32 2048, 2048
      %1166 = vsyncadd [#allocation5], %s1165
      %s1167 = sshll.u32 [#allocation11], 4
      %s1168 = int_to_ptr.vmem [resolvable:$true] %s1167
      %1173 = dma.vmem_to_hbm [thread:$0]  %s1168, 2048, %s4, [#allocation5], 1024, 1024, 64
    $region37: #{tpu_custom_call.1} parent=1 // pred_fallthru
      _
    // Predicated region
    $region38: #{tpu_custom_call.1} parent=1 // pred_check
      _
    $region39: #{tpu_custom_call.1} parent=1 // pred_check_branch
      %1175 = sbr.rel (0) target = $region41
    $region40: #{tpu_custom_call.1} parent=1 // pred_region
      %1176 = dma.done [#allocation5], 2048
    $region41: #{tpu_custom_call.1} parent=1 // pred_fallthru
      _
    %1177 = vsyncpa [#allocation4], 1
    %1178 = vsyncpa [#allocation7], 1
    %1179 = vsyncpa [#allocation10], 1
    %1180 = vsyncpa [#allocation5], 1

// kernel: tpu_custom_call.1
$region0: #{tpu_custom_call.1}
  #allocation0 [shape = 'u32[]', space=smem, size = 0x4, offset = 0x4, fixed_abs, tag = 'smem constant byte address 0x4 - core index']
  #allocation1 [shape = 'u32[144,128]{1,0:T(1,128)}', space=vmem, size = 0x12000, scoped, tag = 'internal scratch']
  #allocation2 [shape = 'bf16[16,256]{1,0:T(16,128)(2,1)}', space=vmem, size = 0x2000, scoped, tag = 'scratch operand']
  %s0 = inlined_call_operand.hbm [shape: f32[2,4,256], index: 0, kind: input, shape index: {}]
  %s1 = inlined_call_operand.hbm [shape: bf16[8,4], index: 1, kind: input, shape index: {}]
  %s2 = inlined_call_operand.hbm [shape: f32[8,1], index: 2, kind: input, shape index: {}]
  %s3 = inlined_call_operand.hbm [shape: bf16[256,1024], index: 3, kind: input, shape index: {}]
  %s4 = inlined_call_operand.hbm [shape: f32[2,8,1024], index: 4, kind: output, shape index: {}]
  %s5 = sld [smem:[#allocation0]]
  $region42: #{tpu_custom_call.1} parent=0
    _
  %s7 = ssub.s32 1, %s5
  %s8 = scalar_select 0, %s7, %s5
  $region1: #{tpu_custom_call.1} parent=0
    #allocation3 [shape = 'u8[8192]{0}', space=vmem, size = 0x2000, scoped, tag = 'input window, operand 0, single buffered']
    #allocation4 [shape = 's32[1]{0}', space=sflag, size = 0x4, scoped, tag = 'scoped memory for tpu_custom_call.1']
    #allocation5 [shape = 's32[1]{0}', space=sflag, size = 0x4, scoped, tag = 'scoped memory for tpu_custom_call.1']
    #allocation6 [shape = 'u8[2048]{0}', space=vmem, size = 0x800, scoped, tag = 'input window, operand 1, single buffered']
    #allocation7 [shape = 's32[1]{0}', space=sflag, size = 0x4, scoped, tag = 'scoped memory for tpu_custom_call.1']
    #allocation8 [shape = 'u8[4096]{0}', space=vmem, size = 0x1000, scoped, tag = 'input window, operand 2, single buffered']
    #allocation9 [shape = 'u8[524288]{0}', space=vmem, size = 0x80000, scoped, tag = 'input window, operand 3, single buffered']
    #allocation10 [shape = 's32[1]{0}', space=sflag, size = 0x4, scoped, tag = 'scoped memory for tpu_custom_call.1']
    #allocation11 [shape = 'u8[65536]{0}', space=vmem, size = 0x10000, scoped, tag = 'output window, operand 0, single buffered']
    %9 = vsyncpa [#allocation4], 0
    %10 = vsyncpa [#allocation7], 0
    %11 = vsyncpa [#allocation10], 0
    %12 = vsyncpa [#allocation5], 0
    // Predicated region
    $region2: #{tpu_custom_call.1} parent=1 // pred_check
      _
    $region3: #{tpu_custom_call.1} parent=1 // pred_check_branch
      %14 = sbr.rel (0) target = $region5
    $region4: #{tpu_custom_call.1} parent=1 // pred_region
      %s16 = ssub.s32 256, 256
      %17 = vsyncadd [#allocation4], %s16
      %s18 = sshll.u32 [#allocation3], 4
      %s19 = int_to_ptr.vmem [resolvable:$true] %s18
      %24 = dma.hbm_to_vmem [thread:$0]  %s0, 256, %s19, [#allocation4], 128, 128, 8
    $region5: #{tpu_custom_call.1} parent=1 // pred_fallthru
      _
    // Predicated region
    $region6: #{tpu_custom_call.1} parent=1 // pred_check
      _
    $region7: #{tpu_custom_call.1} parent=1 // pred_check_branch
      %26 = sbr.rel (0) target = $region9
    $region8: #{tpu_custom_call.1} parent=1 // pred_region
      %s28 = ssub.s32 64, 64
      %29 = vsyncadd [#allocation7], %s28
      %s31 = sshll.u32 [#allocation6], 4
      %s32 = int_to_ptr.vmem [resolvable:$true] %s31
      %34 = dma.hbm_to_vmem [thread:$0]  %s1, 64, %s32, [#allocation7]
    $region9: #{tpu_custom_call.1} parent=1 // pred_fallthru
      _
    // Predicated region
    $region10: #{tpu_custom_call.1} parent=1 // pred_check
      _
    $region11: #{tpu_custom_call.1} parent=1 // pred_check_branch
      %36 = sbr.rel (0) target = $region13
    $region12: #{tpu_custom_call.1} parent=1 // pred_region
      %s38 = ssub.s32 128, 128
      %39 = vsyncadd [#allocation7], %s38
      %s41 = sshll.u32 [#allocation8], 4
      %s42 = int_to_ptr.vmem [resolvable:$true] %s41
      %44 = dma.hbm_to_vmem [thread:$0]  %s2, 128, %s42, [#allocation7]
    $region13: #{tpu_custom_call.1} parent=1 // pred_fallthru
      _
    // Predicated region
    $region14: #{tpu_custom_call.1} parent=1 // pred_check
      _
    $region15: #{tpu_custom_call.1} parent=1 // pred_check_branch
      %46 = sbr.rel (0) target = $region17
    $region16: #{tpu_custom_call.1} parent=1 // pred_region
      %s48 = ssub.s32 16384, 16384
      %49 = vsyncadd [#allocation10], %s48
      %s50 = sshll.u32 [#allocation9], 4
      %s51 = int_to_ptr.vmem [resolvable:$true] %s50
      %56 = dma.hbm_to_vmem [thread:$0]  %s3, 16384, %s51, [#allocation10], 512, 512, 32
    $region17: #{tpu_custom_call.1} parent=1 // pred_fallthru
      _
    // Predicated region
    $region18: #{tpu_custom_call.1} parent=1 // pred_check
      _
    $region19: #{tpu_custom_call.1} parent=1 // pred_check_branch
      %58 = sbr.rel (0) target = $region21
    $region20: #{tpu_custom_call.1} parent=1 // pred_region
      %59 = dma.done [#allocation4], 256
    $region21: #{tpu_custom_call.1} parent=1 // pred_fallthru
      _
    // Predicated region
    $region22: #{tpu_custom_call.1} parent=1 // pred_check
      _
    $region23: #{tpu_custom_call.1} parent=1 // pred_check_branch
      %61 = sbr.rel (0) target = $region25
    $region24: #{tpu_custom_call.1} parent=1 // pred_region
      %62 = dma.done [#allocation7], 64
    $region25: #{tpu_custom_call.1} parent=1 // pred_fallthru
      _
    // Predicated region
    $region26: #{tpu_custom_call.1} parent=1 // pred_check
      _
    $region27: #{tpu_custom_call.1} parent=1 // pred_check_branch
      %64 = sbr.rel (0) target = $region29
    $region28: #{tpu_custom_call.1} parent=1 // pred_region
      %65 = dma.done [#allocation7], 128
    $region29: #{tpu_custom_call.1} parent=1 // pred_fallthru
      _
    // Predicated region
    $region30: #{tpu_custom_call.1} parent=1 // pred_check
      _
    $region31: #{tpu_custom_call.1} parent=1 // pred_check_branch
      %67 = sbr.rel (0) target = $region33
    $region32: #{tpu_custom_call.1} parent=1 // pred_region
      %68 = dma.done [#allocation10], 16384
    $region33: #{tpu_custom_call.1} parent=1 // pred_fallthru
      _
    %v70 = vld [vmem:[#allocation6] sm:$0xf]
    %v71 = vld [vmem:[#allocation8] sm:$0xff]
    %v72 = vld [vmem:[#allocation3] sm:$0xff]
    %v74 = vcombine.high %v72, %v72
    %v76 = vpack.c.bf16 %v72, %v72
    %v77 = vpack.c.bf16 %v74, %v74
    %79 = vset.pattern.permute.xlu0 0
    %80 = vperm.xlu0 %79, %v71
    %v81 = vpop.permute.xlu0 %80
    %vm83 = vcmask 31744
    %v85 = vsel %vm83, %v70, 0
    %vm87 = vcmask 1041408
    %v89 = vsel %vm87, %v76, 0
    %v92 = vsel %vm87, %v77, 0
    %94 = vmatprep.subr.bf16.mxu0 %v92
    %95 = vmatpush1.bf16.msra.mxu0 %v89
    %96 = vmatprep.subr.bf16.mxu0 0
    %97 = vmatpush1.bf16.msra.mxu0 0
    %98 = vmatprep.subr.bf16.mxu0 0
    %99 = vmatpush1.bf16.msra.mxu0 0
    %100 = vmatprep.subr.bf16.mxu0 0
    %101 = vmatpush1.bf16.msra.mxu0 0
    %102 = vmatprep.subr.bf16.mxu0 0
    %103 = vmatpush1.bf16.msra.mxu0 0
    %104 = vmatprep.subr.bf16.mxu0 0
    %105 = vmatpush1.bf16.msra.mxu0 0
    %106 = vmatprep.subr.bf16.mxu0 0
    %107 = vmatpush1.bf16.msra.mxu0 0
    %108 = vmatprep.subr.bf16.mxu0 0
    %109 = vmatpush1.bf16.msra.mxu0 0
    %110 = vmatprep.subr.bf16.mxu0 0
    %111 = vmatpush1.bf16.msra.mxu0 0
    %112 = vmatprep.subr.bf16.mxu0 0
    %113 = vmatpush1.bf16.msra.mxu0 0
    %114 = vmatprep.subr.bf16.mxu0 0
    %115 = vmatpush1.bf16.msra.mxu0 0
    %116 = vmatprep.subr.bf16.mxu0 0
    %117 = vmatpush1.bf16.msra.mxu0 0
    %118 = vmatprep.subr.bf16.mxu0 0
    %119 = vmatpush1.bf16.msra.mxu0 0
    %120 = vmatprep.subr.bf16.mxu0 0
    %121 = vmatpush1.bf16.msra.mxu0 0
    %122 = vmatprep.subr.bf16.mxu0 0
    %123 = vmatpush1.bf16.msra.mxu0 0
    %124 = vmatprep.subr.bf16.mxu0 0
    %125 = vmatpush1.bf16.msra.mxu0 0
    %126 = vmatprep.mubr.bf16.mxu0 0
    %127 = vmatmul.mubr.bf16.gmra.mrb[0].mxu0 %v85
    %v128 = vpop.f32.mrb[0].mxu0
    %v129 = vadd.f32 %v81, %v128
    %v130 = vpop.f32.mrb[0].mxu0
    %v131 = vadd.f32 %v81, %v130
    %v132 = vpop.f32.mrb[0].mxu0
    %v133 = vpop.f32.mrb[0].mxu0
    %134 = vdwg.mxu0
    %v135 = vpack.c.bf16 %v129, %v129
    %v136 = vpack.c.bf16 %v131, %v131
    %137 = vst [vmem:[#allocation2] sm:$0xf] %v135
    %138 = vst [vmem:[#allocation2 + $0x8] sm:$0xf] %v136
    %s139 = scalar_lea.vmem [#allocation3], 8
    %v140 = vld [vmem:[%s139] sm:$0xff]
    %v142 = vcombine.high %v140, %v140
    %v144 = vpack.c.bf16 %v140, %v140
    %v145 = vpack.c.bf16 %v142, %v142
    %v147 = vsel %vm87, %v144, 0
    %v150 = vsel %vm87, %v145, 0
    %152 = vmatprep.subr.bf16.mxu0 %v150
    %153 = vmatpush1.bf16.msra.mxu0 %v147
    %154 = vmatprep.subr.bf16.mxu0 0
    %155 = vmatpush1.bf16.msra.mxu0 0
    %156 = vmatprep.subr.bf16.mxu0 0
    %157 = vmatpush1.bf16.msra.mxu0 0
    %158 = vmatprep.subr.bf16.mxu0 0
    %159 = vmatpush1.bf16.msra.mxu0 0
    %160 = vmatprep.subr.bf16.mxu0 0
    %161 = vmatpush1.bf16.msra.mxu0 0
    %162 = vmatprep.subr.bf16.mxu0 0
    %163 = vmatpush1.bf16.msra.mxu0 0
    %164 = vmatprep.subr.bf16.mxu0 0
    %165 = vmatpush1.bf16.msra.mxu0 0
    %166 = vmatprep.subr.bf16.mxu0 0
    %167 = vmatpush1.bf16.msra.mxu0 0
    %168 = vmatprep.subr.bf16.mxu0 0
    %169 = vmatpush1.bf16.msra.mxu0 0
    %170 = vmatprep.subr.bf16.mxu0 0
    %171 = vmatpush1.bf16.msra.mxu0 0
    %172 = vmatprep.subr.bf16.mxu0 0
    %173 = vmatpush1.bf16.msra.mxu0 0
    %174 = vmatprep.subr.bf16.mxu0 0
    %175 = vmatpush1.bf16.msra.mxu0 0
    %176 = vmatprep.subr.bf16.mxu0 0
    %177 = vmatpush1.bf16.msra.mxu0 0
    %178 = vmatprep.subr.bf16.mxu0 0
    %179 = vmatpush1.bf16.msra.mxu0 0
    %180 = vmatprep.subr.bf16.mxu0 0
    %181 = vmatpush1.bf16.msra.mxu0 0
    %182 = vmatprep.subr.bf16.mxu0 0
    %183 = vmatpush1.bf16.msra.mxu0 0
    %184 = vmatprep.mubr.bf16.mxu0 0
    %185 = vmatmul.mubr.bf16.gmra.mrb[0].mxu0 %v85
    %v186 = vpop.f32.mrb[0].mxu0
    %v187 = vadd.f32 %v81, %v186
    %v188 = vpop.f32.mrb[0].mxu0
    %v189 = vadd.f32 %v81, %v188
    %v190 = vpop.f32.mrb[0].mxu0
    %v191 = vpop.f32.mrb[0].mxu0
    %192 = vdwg.mxu0
    %v193 = vpack.c.bf16 %v187, %v187
    %v194 = vpack.c.bf16 %v189, %v189
    %v197 = vrot.slane %v193, 4
    %v198 = vrot.slane %v194, 4
    %201 = vst [vmem:[#allocation2] sm:$0xf0] %v197
    %202 = vst [vmem:[#allocation2 + $0x8] sm:$0xf0] %v198
    %v203 = vld [vmem:[#allocation2] sm:$0xff]
    %v204 = vld [vmem:[#allocation2 + $0x8] sm:$0xff]
    %v205 = vld [vmem:[#allocation9] sm:$0xff]
    %v206 = vld [vmem:[#allocation9 + $0x8] sm:$0xff]
    %v207 = vld [vmem:[#allocation9 + $0x10] sm:$0xff]
    %v208 = vld [vmem:[#allocation9 + $0x18] sm:$0xff]
    %v209 = vld [vmem:[#allocation9 + $0x20] sm:$0xff]
    %v210 = vld [vmem:[#allocation9 + $0x28] sm:$0xff]
    %v211 = vld [vmem:[#allocation9 + $0x30] sm:$0xff]
    %v212 = vld [vmem:[#allocation9 + $0x38] sm:$0xff]
    %v213 = vld [vmem:[#allocation9 + $0x40] sm:$0xff]
    %v214 = vld [vmem:[#allocation9 + $0x48] sm:$0xff]
    %v215 = vld [vmem:[#allocation9 + $0x50] sm:$0xff]
    %v216 = vld [vmem:[#allocation9 + $0x58] sm:$0xff]
    %v217 = vld [vmem:[#allocation9 + $0x60] sm:$0xff]
    %v218 = vld [vmem:[#allocation9 + $0x68] sm:$0xff]
    %v219 = vld [vmem:[#allocation9 + $0x70] sm:$0xff]
    %v220 = vld [vmem:[#allocation9 + $0x78] sm:$0xff]
    %v221 = vld [vmem:[#allocation9 + $0x80] sm:$0xff]
    %v222 = vld [vmem:[#allocation9 + $0x88] sm:$0xff]
    %v223 = vld [vmem:[#allocation9 + $0x90] sm:$0xff]
    %v224 = vld [vmem:[#allocation9 + $0x98] sm:$0xff]
    %v225 = vld [vmem:[#allocation9 + $0xa0] sm:$0xff]
    %v226 = vld [vmem:[#allocation9 + $0xa8] sm:$0xff]
    %v227 = vld [vmem:[#allocation9 + $0xb0] sm:$0xff]
    %v228 = vld [vmem:[#allocation9 + $0xb8] sm:$0xff]
    %v229 = vld [vmem:[#allocation9 + $0xc0] sm:$0xff]
    %v230 = vld [vmem:[#allocation9 + $0xc8] sm:$0xff]
    %v231 = vld [vmem:[#allocation9 + $0xd0] sm:$0xff]
    %v232 = vld [vmem:[#allocation9 + $0xd8] sm:$0xff]
    %v233 = vld [vmem:[#allocation9 + $0xe0] sm:$0xff]
    %v234 = vld [vmem:[#allocation9 + $0xe8] sm:$0xff]
    %v235 = vld [vmem:[#allocation9 + $0xf0] sm:$0xff]
    %v236 = vld [vmem:[#allocation9 + $0xf8] sm:$0xff]
    %v237 = vld [vmem:[#allocation9 + $0x100] sm:$0xff]
    %v238 = vld [vmem:[#allocation9 + $0x108] sm:$0xff]
    %v239 = vld [vmem:[#allocation9 + $0x110] sm:$0xff]
    %v240 = vld [vmem:[#allocation9 + $0x118] sm:$0xff]
    %v241 = vld [vmem:[#allocation9 + $0x120] sm:$0xff]
    %v242 = vld [vmem:[#allocation9 + $0x128] sm:$0xff]
    %v243 = vld [vmem:[#allocation9 + $0x130] sm:$0xff]
    %v244 = vld [vmem:[#allocation9 + $0x138] sm:$0xff]
    %v245 = vld [vmem:[#allocation9 + $0x140] sm:$0xff]
    %v246 = vld [vmem:[#allocation9 + $0x148] sm:$0xff]
    %v247 = vld [vmem:[#allocation9 + $0x150] sm:$0xff]
    %v248 = vld [vmem:[#allocation9 + $0x158] sm:$0xff]
    %v249 = vld [vmem:[#allocation9 + $0x160] sm:$0xff]
    %v250 = vld [vmem:[#allocation9 + $0x168] sm:$0xff]
    %v251 = vld [vmem:[#allocation9 + $0x170] sm:$0xff]
    %v252 = vld [vmem:[#allocation9 + $0x178] sm:$0xff]
    %v253 = vld [vmem:[#allocation9 + $0x180] sm:$0xff]
    %v254 = vld [vmem:[#allocation9 + $0x188] sm:$0xff]
    %v255 = vld [vmem:[#allocation9 + $0x190] sm:$0xff]
    %v256 = vld [vmem:[#allocation9 + $0x198] sm:$0xff]
    %v257 = vld [vmem:[#allocation9 + $0x1a0] sm:$0xff]
    %v258 = vld [vmem:[#allocation9 + $0x1a8] sm:$0xff]
    %v259 = vld [vmem:[#allocation9 + $0x1b0] sm:$0xff]
    %v260 = vld [vmem:[#allocation9 + $0x1b8] sm:$0xff]
    %v261 = vld [vmem:[#allocation9 + $0x1c0] sm:$0xff]
    %v262 = vld [vmem:[#allocation9 + $0x1c8] sm:$0xff]
    %v263 = vld [vmem:[#allocation9 + $0x1d0] sm:$0xff]
    %v264 = vld [vmem:[#allocation9 + $0x1d8] sm:$0xff]
    %v265 = vld [vmem:[#allocation9 + $0x1e0] sm:$0xff]
    %v266 = vld [vmem:[#allocation9 + $0x1e8] sm:$0xff]
    %v267 = vld [vmem:[#allocation9 + $0x1f0] sm:$0xff]
    %v268 = vld [vmem:[#allocation9 + $0x1f8] sm:$0xff]
    %v269 = vld [vmem:[#allocation9 + $0x200] sm:$0xff]
    %v270 = vld [vmem:[#allocation9 + $0x208] sm:$0xff]
    %v271 = vld [vmem:[#allocation9 + $0x210] sm:$0xff]
    %v272 = vld [vmem:[#allocation9 + $0x218] sm:$0xff]
    %v273 = vld [vmem:[#allocation9 + $0x220] sm:$0xff]
    %v274 = vld [vmem:[#allocation9 + $0x228] sm:$0xff]
    %v275 = vld [vmem:[#allocation9 + $0x230] sm:$0xff]
    %v276 = vld [vmem:[#allocation9 + $0x238] sm:$0xff]
    %v277 = vld [vmem:[#allocation9 + $0x240] sm:$0xff]
    %v278 = vld [vmem:[#allocation9 + $0x248] sm:$0xff]
    %v279 = vld [vmem:[#allocation9 + $0x250] sm:$0xff]
    %v280 = vld [vmem:[#allocation9 + $0x258] sm:$0xff]
    %v281 = vld [vmem:[#allocation9 + $0x260] sm:$0xff]
    %v282 = vld [vmem:[#allocation9 + $0x268] sm:$0xff]
    %v283 = vld [vmem:[#allocation9 + $0x270] sm:$0xff]
    %v284 = vld [vmem:[#allocation9 + $0x278] sm:$0xff]
    %v285 = vld [vmem:[#allocation9 + $0x280] sm:$0xff]
    %v286 = vld [vmem:[#allocation9 + $0x288] sm:$0xff]
    %v287 = vld [vmem:[#allocation9 + $0x290] sm:$0xff]
    %v288 = vld [vmem:[#allocation9 + $0x298] sm:$0xff]
    %v289 = vld [vmem:[#allocation9 + $0x2a0] sm:$0xff]
    %v290 = vld [vmem:[#allocation9 + $0x2a8] sm:$0xff]
    %v291 = vld [vmem:[#allocation9 + $0x2b0] sm:$0xff]
    %v292 = vld [vmem:[#allocation9 + $0x2b8] sm:$0xff]
    %v293 = vld [vmem:[#allocation9 + $0x2c0] sm:$0xff]
    %v294 = vld [vmem:[#allocation9 + $0x2c8] sm:$0xff]
    %v295 = vld [vmem:[#allocation9 + $0x2d0] sm:$0xff]
    %v296 = vld [vmem:[#allocation9 + $0x2d8] sm:$0xff]
    %v297 = vld [vmem:[#allocation9 + $0x2e0] sm:$0xff]
    %v298 = vld [vmem:[#allocation9 + $0x2e8] sm:$0xff]
    %v299 = vld [vmem:[#allocation9 + $0x2f0] sm:$0xff]
    %v300 = vld [vmem:[#allocation9 + $0x2f8] sm:$0xff]
    %v301 = vld [vmem:[#allocation9 + $0x300] sm:$0xff]
    %v302 = vld [vmem:[#allocation9 + $0x308] sm:$0xff]
    %v303 = vld [vmem:[#allocation9 + $0x310] sm:$0xff]
    %v304 = vld [vmem:[#allocation9 + $0x318] sm:$0xff]
    %v305 = vld [vmem:[#allocation9 + $0x320] sm:$0xff]
    %v306 = vld [vmem:[#allocation9 + $0x328] sm:$0xff]
    %v307 = vld [vmem:[#allocation9 + $0x330] sm:$0xff]
    %v308 = vld [vmem:[#allocation9 + $0x338] sm:$0xff]
    %v309 = vld [vmem:[#allocation9 + $0x340] sm:$0xff]
    %v310 = vld [vmem:[#allocation9 + $0x348] sm:$0xff]
    %v311 = vld [vmem:[#allocation9 + $0x350] sm:$0xff]
    %v312 = vld [vmem:[#allocation9 + $0x358] sm:$0xff]
    %v313 = vld [vmem:[#allocation9 + $0x360] sm:$0xff]
    %v314 = vld [vmem:[#allocation9 + $0x368] sm:$0xff]
    %v315 = vld [vmem:[#allocation9 + $0x370] sm:$0xff]
    %v316 = vld [vmem:[#allocation9 + $0x378] sm:$0xff]
    %v317 = vld [vmem:[#allocation9 + $0x380] sm:$0xff]
    %v318 = vld [vmem:[#allocation9 + $0x388] sm:$0xff]
    %v319 = vld [vmem:[#allocation9 + $0x390] sm:$0xff]
    %v320 = vld [vmem:[#allocation9 + $0x398] sm:$0xff]
    %v321 = vld [vmem:[#allocation9 + $0x3a0] sm:$0xff]
    %v322 = vld [vmem:[#allocation9 + $0x3a8] sm:$0xff]
    %v323 = vld [vmem:[#allocation9 + $0x3b0] sm:$0xff]
    %v324 = vld [vmem:[#allocation9 + $0x3b8] sm:$0xff]
    %v325 = vld [vmem:[#allocation9 + $0x3c0] sm:$0xff]
    %v326 = vld [vmem:[#allocation9 + $0x3c8] sm:$0xff]
    %v327 = vld [vmem:[#allocation9 + $0x3d0] sm:$0xff]
    %v328 = vld [vmem:[#allocation9 + $0x3d8] sm:$0xff]
    %v329 = vld [vmem:[#allocation9 + $0x3e0] sm:$0xff]
    %v330 = vld [vmem:[#allocation9 + $0x3e8] sm:$0xff]
    %v331 = vld [vmem:[#allocation9 + $0x3f0] sm:$0xff]
    %v332 = vld [vmem:[#allocation9 + $0x3f8] sm:$0xff]
    %v461 = vunpack.c.l.b16 %v205
    %v462 = vunpack.c.h.b16 %v205
    %v463 = vunpack.c.l.b16 %v206
    %v464 = vunpack.c.h.b16 %v206
    %v465 = vunpack.c.l.b16 %v207
    %v466 = vunpack.c.h.b16 %v207
    %v467 = vunpack.c.l.b16 %v208
    %v468 = vunpack.c.h.b16 %v208
    %v469 = vunpack.c.l.b16 %v209
    %v470 = vunpack.c.h.b16 %v209
    %v471 = vunpack.c.l.b16 %v210
    %v472 = vunpack.c.h.b16 %v210
    %v473 = vunpack.c.l.b16 %v211
    %v474 = vunpack.c.h.b16 %v211
    %v475 = vunpack.c.l.b16 %v212
    %v476 = vunpack.c.h.b16 %v212
    %v477 = vunpack.c.l.b16 %v213
    %v478 = vunpack.c.h.b16 %v213
    %v479 = vunpack.c.l.b16 %v214
    %v480 = vunpack.c.h.b16 %v214
    %v481 = vunpack.c.l.b16 %v215
    %v482 = vunpack.c.h.b16 %v215
    %v483 = vunpack.c.l.b16 %v216
    %v484 = vunpack.c.h.b16 %v216
    %v485 = vunpack.c.l.b16 %v217
    %v486 = vunpack.c.h.b16 %v217
    %v487 = vunpack.c.l.b16 %v218
    %v488 = vunpack.c.h.b16 %v218
    %v489 = vunpack.c.l.b16 %v219
    %v490 = vunpack.c.h.b16 %v219
    %v491 = vunpack.c.l.b16 %v220
    %v492 = vunpack.c.h.b16 %v220
    %v493 = vunpack.c.l.b16 %v221
    %v494 = vunpack.c.h.b16 %v221
    %v495 = vunpack.c.l.b16 %v222
    %v496 = vunpack.c.h.b16 %v222
    %v497 = vunpack.c.l.b16 %v223
    %v498 = vunpack.c.h.b16 %v223
    %v499 = vunpack.c.l.b16 %v224
    %v500 = vunpack.c.h.b16 %v224
    %v501 = vunpack.c.l.b16 %v225
    %v502 = vunpack.c.h.b16 %v225
    %v503 = vunpack.c.l.b16 %v226
    %v504 = vunpack.c.h.b16 %v226
    %v505 = vunpack.c.l.b16 %v227
    %v506 = vunpack.c.h.b16 %v227
    %v507 = vunpack.c.l.b16 %v228
    %v508 = vunpack.c.h.b16 %v228
    %v509 = vunpack.c.l.b16 %v229
    %v510 = vunpack.c.h.b16 %v229
    %v511 = vunpack.c.l.b16 %v230
    %v512 = vunpack.c.h.b16 %v230
    %v513 = vunpack.c.l.b16 %v231
    %v514 = vunpack.c.h.b16 %v231
    %v515 = vunpack.c.l.b16 %v232
    %v516 = vunpack.c.h.b16 %v232
    %v517 = vunpack.c.l.b16 %v233
    %v518 = vunpack.c.h.b16 %v233
    %v519 = vunpack.c.l.b16 %v234
    %v520 = vunpack.c.h.b16 %v234
    %v521 = vunpack.c.l.b16 %v235
    %v522 = vunpack.c.h.b16 %v235
    %v523 = vunpack.c.l.b16 %v236
    %v524 = vunpack.c.h.b16 %v236
    %v525 = vunpack.c.l.b16 %v237
    %v526 = vunpack.c.h.b16 %v237
    %v527 = vunpack.c.l.b16 %v238
    %v528 = vunpack.c.h.b16 %v238
    %v529 = vunpack.c.l.b16 %v239
    %v530 = vunpack.c.h.b16 %v239
    %v531 = vunpack.c.l.b16 %v240
    %v532 = vunpack.c.h.b16 %v240
    %v533 = vunpack.c.l.b16 %v241
    %v534 = vunpack.c.h.b16 %v241
    %v535 = vunpack.c.l.b16 %v242
    %v536 = vunpack.c.h.b16 %v242
    %v537 = vunpack.c.l.b16 %v243
    %v538 = vunpack.c.h.b16 %v243
    %v539 = vunpack.c.l.b16 %v244
    %v540 = vunpack.c.h.b16 %v244
    %v541 = vunpack.c.l.b16 %v245
    %v542 = vunpack.c.h.b16 %v245
    %v543 = vunpack.c.l.b16 %v246
    %v544 = vunpack.c.h.b16 %v246
    %v545 = vunpack.c.l.b16 %v247
    %v546 = vunpack.c.h.b16 %v247
    %v547 = vunpack.c.l.b16 %v248
    %v548 = vunpack.c.h.b16 %v248
    %v549 = vunpack.c.l.b16 %v249
    %v550 = vunpack.c.h.b16 %v249
    %v551 = vunpack.c.l.b16 %v250
    %v552 = vunpack.c.h.b16 %v250
    %v553 = vunpack.c.l.b16 %v251
    %v554 = vunpack.c.h.b16 %v251
    %v555 = vunpack.c.l.b16 %v252
    %v556 = vunpack.c.h.b16 %v252
    %v557 = vunpack.c.l.b16 %v253
    %v558 = vunpack.c.h.b16 %v253
    %v559 = vunpack.c.l.b16 %v254
    %v560 = vunpack.c.h.b16 %v254
    %v561 = vunpack.c.l.b16 %v255
    %v562 = vunpack.c.h.b16 %v255
    %v563 = vunpack.c.l.b16 %v256
    %v564 = vunpack.c.h.b16 %v256
    %v565 = vunpack.c.l.b16 %v257
    %v566 = vunpack.c.h.b16 %v257
    %v567 = vunpack.c.l.b16 %v258
    %v568 = vunpack.c.h.b16 %v258
    %v569 = vunpack.c.l.b16 %v259
    %v570 = vunpack.c.h.b16 %v259
    %v571 = vunpack.c.l.b16 %v260
    %v572 = vunpack.c.h.b16 %v260
    %v573 = vunpack.c.l.b16 %v261
    %v574 = vunpack.c.h.b16 %v261
    %v575 = vunpack.c.l.b16 %v262
    %v576 = vunpack.c.h.b16 %v262
    %v577 = vunpack.c.l.b16 %v263
    %v578 = vunpack.c.h.b16 %v263
    %v579 = vunpack.c.l.b16 %v264
    %v580 = vunpack.c.h.b16 %v264
    %v581 = vunpack.c.l.b16 %v265
    %v582 = vunpack.c.h.b16 %v265
    %v583 = vunpack.c.l.b16 %v266
    %v584 = vunpack.c.h.b16 %v266
    %v585 = vunpack.c.l.b16 %v267
    %v586 = vunpack.c.h.b16 %v267
    %v587 = vunpack.c.l.b16 %v268
    %v588 = vunpack.c.h.b16 %v268
    %v589 = vunpack.c.l.b16 %v269
    %v590 = vunpack.c.h.b16 %v269
    %v591 = vunpack.c.l.b16 %v270
    %v592 = vunpack.c.h.b16 %v270
    %v593 = vunpack.c.l.b16 %v271
    %v594 = vunpack.c.h.b16 %v271
    %v595 = vunpack.c.l.b16 %v272
    %v596 = vunpack.c.h.b16 %v272
    %v597 = vunpack.c.l.b16 %v273
    %v598 = vunpack.c.h.b16 %v273
    %v599 = vunpack.c.l.b16 %v274
    %v600 = vunpack.c.h.b16 %v274
    %v601 = vunpack.c.l.b16 %v275
    %v602 = vunpack.c.h.b16 %v275
    %v603 = vunpack.c.l.b16 %v276
    %v604 = vunpack.c.h.b16 %v276
    %v605 = vunpack.c.l.b16 %v277
    %v606 = vunpack.c.h.b16 %v277
    %v607 = vunpack.c.l.b16 %v278
    %v608 = vunpack.c.h.b16 %v278
    %v609 = vunpack.c.l.b16 %v279
    %v610 = vunpack.c.h.b16 %v279
    %v611 = vunpack.c.l.b16 %v280
    %v612 = vunpack.c.h.b16 %v280
    %v613 = vunpack.c.l.b16 %v281
    %v614 = vunpack.c.h.b16 %v281
    %v615 = vunpack.c.l.b16 %v282
    %v616 = vunpack.c.h.b16 %v282
    %v617 = vunpack.c.l.b16 %v283
    %v618 = vunpack.c.h.b16 %v283
    %v619 = vunpack.c.l.b16 %v284
    %v620 = vunpack.c.h.b16 %v284
    %v621 = vunpack.c.l.b16 %v285
    %v622 = vunpack.c.h.b16 %v285
    %v623 = vunpack.c.l.b16 %v286
    %v624 = vunpack.c.h.b16 %v286
    %v625 = vunpack.c.l.b16 %v287
    %v626 = vunpack.c.h.b16 %v287
    %v627 = vunpack.c.l.b16 %v288
    %v628 = vunpack.c.h.b16 %v288
    %v629 = vunpack.c.l.b16 %v289
    %v630 = vunpack.c.h.b16 %v289
    %v631 = vunpack.c.l.b16 %v290
    %v632 = vunpack.c.h.b16 %v290
    %v633 = vunpack.c.l.b16 %v291
    %v634 = vunpack.c.h.b16 %v291
    %v635 = vunpack.c.l.b16 %v292
    %v636 = vunpack.c.h.b16 %v292
    %v637 = vunpack.c.l.b16 %v293
    %v638 = vunpack.c.h.b16 %v293
    %v639 = vunpack.c.l.b16 %v294
    %v640 = vunpack.c.h.b16 %v294
    %v641 = vunpack.c.l.b16 %v295
    %v642 = vunpack.c.h.b16 %v295
    %v643 = vunpack.c.l.b16 %v296
    %v644 = vunpack.c.h.b16 %v296
    %v645 = vunpack.c.l.b16 %v297
    %v646 = vunpack.c.h.b16 %v297
    %v647 = vunpack.c.l.b16 %v298
    %v648 = vunpack.c.h.b16 %v298
    %v649 = vunpack.c.l.b16 %v299
    %v650 = vunpack.c.h.b16 %v299
    %v651 = vunpack.c.l.b16 %v300
    %v652 = vunpack.c.h.b16 %v300
    %v653 = vunpack.c.l.b16 %v301
    %v654 = vunpack.c.h.b16 %v301
    %v655 = vunpack.c.l.b16 %v302
    %v656 = vunpack.c.h.b16 %v302
    %v657 = vunpack.c.l.b16 %v303
    %v658 = vunpack.c.h.b16 %v303
    %v659 = vunpack.c.l.b16 %v304
    %v660 = vunpack.c.h.b16 %v304
    %v661 = vunpack.c.l.b16 %v305
    %v662 = vunpack.c.h.b16 %v305
    %v663 = vunpack.c.l.b16 %v306
    %v664 = vunpack.c.h.b16 %v306
    %v665 = vunpack.c.l.b16 %v307
    %v666 = vunpack.c.h.b16 %v307
    %v667 = vunpack.c.l.b16 %v308
    %v668 = vunpack.c.h.b16 %v308
    %v669 = vunpack.c.l.b16 %v309
    %v670 = vunpack.c.h.b16 %v309
    %v671 = vunpack.c.l.b16 %v310
    %v672 = vunpack.c.h.b16 %v310
    %v673 = vunpack.c.l.b16 %v311
    %v674 = vunpack.c.h.b16 %v311
    %v675 = vunpack.c.l.b16 %v312
    %v676 = vunpack.c.h.b16 %v312
    %v677 = vunpack.c.l.b16 %v313
    %v678 = vunpack.c.h.b16 %v313
    %v679 = vunpack.c.l.b16 %v314
    %v680 = vunpack.c.h.b16 %v314
    %v681 = vunpack.c.l.b16 %v315
    %v682 = vunpack.c.h.b16 %v315
    %v683 = vunpack.c.l.b16 %v316
    %v684 = vunpack.c.h.b16 %v316
    %v685 = vunpack.c.l.b16 %v317
    %v686 = vunpack.c.h.b16 %v317
    %v687 = vunpack.c.l.b16 %v318
    %v688 = vunpack.c.h.b16 %v318
    %v689 = vunpack.c.l.b16 %v319
    %v690 = vunpack.c.h.b16 %v319
    %v691 = vunpack.c.l.b16 %v320
    %v692 = vunpack.c.h.b16 %v320
    %v693 = vunpack.c.l.b16 %v321
    %v694 = vunpack.c.h.b16 %v321
    %v695 = vunpack.c.l.b16 %v322
    %v696 = vunpack.c.h.b16 %v322
    %v697 = vunpack.c.l.b16 %v323
    %v698 = vunpack.c.h.b16 %v323
    %v699 = vunpack.c.l.b16 %v324
    %v700 = vunpack.c.h.b16 %v324
    %v701 = vunpack.c.l.b16 %v325
    %v702 = vunpack.c.h.b16 %v325
    %v703 = vunpack.c.l.b16 %v326
    %v704 = vunpack.c.h.b16 %v326
    %v705 = vunpack.c.l.b16 %v327
    %v706 = vunpack.c.h.b16 %v327
    %v707 = vunpack.c.l.b16 %v328
    %v708 = vunpack.c.h.b16 %v328
    %v709 = vunpack.c.l.b16 %v329
    %v710 = vunpack.c.h.b16 %v329
    %v711 = vunpack.c.l.b16 %v330
    %v712 = vunpack.c.h.b16 %v330
    %v713 = vunpack.c.l.b16 %v331
    %v714 = vunpack.c.h.b16 %v331
    %v715 = vunpack.c.l.b16 %v332
    %v716 = vunpack.c.h.b16 %v332
    %v717 = vpack.c.b16 %v469, %v461
    %v718 = vpack.c.b16 %v470, %v462
    %v719 = vpack.c.b16 %v471, %v463
    %v720 = vpack.c.b16 %v472, %v464
    %v721 = vpack.c.b16 %v473, %v465
    %v722 = vpack.c.b16 %v474, %v466
    %v723 = vpack.c.b16 %v475, %v467
    %v724 = vpack.c.b16 %v476, %v468
    %v725 = vpack.c.b16 %v485, %v477
    %v726 = vpack.c.b16 %v486, %v478
    %v727 = vpack.c.b16 %v487, %v479
    %v728 = vpack.c.b16 %v488, %v480
    %v729 = vpack.c.b16 %v489, %v481
    %v730 = vpack.c.b16 %v490, %v482
    %v731 = vpack.c.b16 %v491, %v483
    %v732 = vpack.c.b16 %v492, %v484
    %v733 = vpack.c.b16 %v501, %v493
    %v734 = vpack.c.b16 %v502, %v494
    %v735 = vpack.c.b16 %v503, %v495
    %v736 = vpack.c.b16 %v504, %v496
    %v737 = vpack.c.b16 %v505, %v497
    %v738 = vpack.c.b16 %v506, %v498
    %v739 = vpack.c.b16 %v507, %v499
    %v740 = vpack.c.b16 %v508, %v500
    %v741 = vpack.c.b16 %v517, %v509
    %v742 = vpack.c.b16 %v518, %v510
    %v743 = vpack.c.b16 %v519, %v511
    %v744 = vpack.c.b16 %v520, %v512
    %v745 = vpack.c.b16 %v521, %v513
    %v746 = vpack.c.b16 %v522, %v514
    %v747 = vpack.c.b16 %v523, %v515
    %v748 = vpack.c.b16 %v524, %v516
    %v749 = vpack.c.b16 %v533, %v525
    %v750 = vpack.c.b16 %v534, %v526
    %v751 = vpack.c.b16 %v535, %v527
    %v752 = vpack.c.b16 %v536, %v528
    %v753 = vpack.c.b16 %v537, %v529
    %v754 = vpack.c.b16 %v538, %v530
    %v755 = vpack.c.b16 %v539, %v531
    %v756 = vpack.c.b16 %v540, %v532
    %v757 = vpack.c.b16 %v549, %v541
    %v758 = vpack.c.b16 %v550, %v542
    %v759 = vpack.c.b16 %v551, %v543
    %v760 = vpack.c.b16 %v552, %v544
    %v761 = vpack.c.b16 %v553, %v545
    %v762 = vpack.c.b16 %v554, %v546
    %v763 = vpack.c.b16 %v555, %v547
    %v764 = vpack.c.b16 %v556, %v548
    %v765 = vpack.c.b16 %v565, %v557
    %v766 = vpack.c.b16 %v566, %v558
    %v767 = vpack.c.b16 %v567, %v559
    %v768 = vpack.c.b16 %v568, %v560
    %v769 = vpack.c.b16 %v569, %v561
    %v770 = vpack.c.b16 %v570, %v562
    %v771 = vpack.c.b16 %v571, %v563
    %v772 = vpack.c.b16 %v572, %v564
    %v773 = vpack.c.b16 %v581, %v573
    %v774 = vpack.c.b16 %v582, %v574
    %v775 = vpack.c.b16 %v583, %v575
    %v776 = vpack.c.b16 %v584, %v576
    %v777 = vpack.c.b16 %v585, %v577
    %v778 = vpack.c.b16 %v586, %v578
    %v779 = vpack.c.b16 %v587, %v579
    %v780 = vpack.c.b16 %v588, %v580
    %v781 = vpack.c.b16 %v597, %v589
    %v782 = vpack.c.b16 %v598, %v590
    %v783 = vpack.c.b16 %v599, %v591
    %v784 = vpack.c.b16 %v600, %v592
    %v785 = vpack.c.b16 %v601, %v593
    %v786 = vpack.c.b16 %v602, %v594
    %v787 = vpack.c.b16 %v603, %v595
    %v788 = vpack.c.b16 %v604, %v596
    %v789 = vpack.c.b16 %v613, %v605
    %v790 = vpack.c.b16 %v614, %v606
    %v791 = vpack.c.b16 %v615, %v607
    %v792 = vpack.c.b16 %v616, %v608
    %v793 = vpack.c.b16 %v617, %v609
    %v794 = vpack.c.b16 %v618, %v610
    %v795 = vpack.c.b16 %v619, %v611
    %v796 = vpack.c.b16 %v620, %v612
    %v797 = vpack.c.b16 %v629, %v621
    %v798 = vpack.c.b16 %v630, %v622
    %v799 = vpack.c.b16 %v631, %v623
    %v800 = vpack.c.b16 %v632, %v624
    %v801 = vpack.c.b16 %v633, %v625
    %v802 = vpack.c.b16 %v634, %v626
    %v803 = vpack.c.b16 %v635, %v627
    %v804 = vpack.c.b16 %v636, %v628
    %v805 = vpack.c.b16 %v645, %v637
    %v806 = vpack.c.b16 %v646, %v638
    %v807 = vpack.c.b16 %v647, %v639
    %v808 = vpack.c.b16 %v648, %v640
    %v809 = vpack.c.b16 %v649, %v641
    %v810 = vpack.c.b16 %v650, %v642
    %v811 = vpack.c.b16 %v651, %v643
    %v812 = vpack.c.b16 %v652, %v644
    %v813 = vpack.c.b16 %v661, %v653
    %v814 = vpack.c.b16 %v662, %v654
    %v815 = vpack.c.b16 %v663, %v655
    %v816 = vpack.c.b16 %v664, %v656
    %v817 = vpack.c.b16 %v665, %v657
    %v818 = vpack.c.b16 %v666, %v658
    %v819 = vpack.c.b16 %v667, %v659
    %v820 = vpack.c.b16 %v668, %v660
    %v821 = vpack.c.b16 %v677, %v669
    %v822 = vpack.c.b16 %v678, %v670
    %v823 = vpack.c.b16 %v679, %v671
    %v824 = vpack.c.b16 %v680, %v672
    %v825 = vpack.c.b16 %v681, %v673
    %v826 = vpack.c.b16 %v682, %v674
    %v827 = vpack.c.b16 %v683, %v675
    %v828 = vpack.c.b16 %v684, %v676
    %v829 = vpack.c.b16 %v693, %v685
    %v830 = vpack.c.b16 %v694, %v686
    %v831 = vpack.c.b16 %v695, %v687
    %v832 = vpack.c.b16 %v696, %v688
    %v833 = vpack.c.b16 %v697, %v689
    %v834 = vpack.c.b16 %v698, %v690
    %v835 = vpack.c.b16 %v699, %v691
    %v836 = vpack.c.b16 %v700, %v692
    %v837 = vpack.c.b16 %v709, %v701
    %v838 = vpack.c.b16 %v710, %v702
    %v839 = vpack.c.b16 %v711, %v703
    %v840 = vpack.c.b16 %v712, %v704
    %v841 = vpack.c.b16 %v713, %v705
    %v842 = vpack.c.b16 %v714, %v706
    %v843 = vpack.c.b16 %v715, %v707
    %v844 = vpack.c.b16 %v716, %v708
    %973 = vmatprep.subr.bf16.mxu0 %v718
    %974 = vmatpush1.bf16.msra.mxu0 %v717
    %975 = vmatprep.subr.bf16.mxu0 %v726
    %976 = vmatpush1.bf16.msra.mxu0 %v725
    %977 = vmatprep.subr.bf16.mxu0 %v734
    %978 = vmatpush1.bf16.msra.mxu0 %v733
    %979 = vmatprep.subr.bf16.mxu0 %v742
    %980 = vmatpush1.bf16.msra.mxu0 %v741
    %981 = vmatprep.subr.bf16.mxu0 %v750
    %982 = vmatpush1.bf16.msra.mxu0 %v749
    %983 = vmatprep.subr.bf16.mxu0 %v758
    %984 = vmatpush1.bf16.msra.mxu0 %v757
    %985 = vmatprep.subr.bf16.mxu0 %v766
    %986 = vmatpush1.bf16.msra.mxu0 %v765
    %987 = vmatprep.subr.bf16.mxu0 %v774
    %988 = vmatpush1.bf16.msra.mxu0 %v773
    %989 = vmatprep.subr.bf16.mxu0 %v782
    %990 = vmatpush1.bf16.msra.mxu0 %v781
    %991 = vmatprep.subr.bf16.mxu0 %v790
    %992 = vmatpush1.bf16.msra.mxu0 %v789
    %993 = vmatprep.subr.bf16.mxu0 %v798
    %994 = vmatpush1.bf16.msra.mxu0 %v797
    %995 = vmatprep.subr.bf16.mxu0 %v806
    %996 = vmatpush1.bf16.msra.mxu0 %v805
    %997 = vmatprep.subr.bf16.mxu0 %v814
    %998 = vmatpush1.bf16.msra.mxu0 %v813
    %999 = vmatprep.subr.bf16.mxu0 %v822
    %1000 = vmatpush1.bf16.msra.mxu0 %v821
    %1001 = vmatprep.subr.bf16.mxu0 %v830
    %1002 = vmatpush1.bf16.msra.mxu0 %v829
    %1003 = vmatprep.subr.bf16.mxu0 %v838
    %1004 = vmatpush1.bf16.msra.mxu0 %v837
    %1005 = vmatprep.mubr.bf16.mxu0 %v204
    %1006 = vmatmul.mubr.bf16.gmra.mrb[0].mxu0 %v203
    %v1007 = vpop.f32.mrb[0].mxu0
    %v1008 = vadd.f32 0.0, %v1007
    %v1009 = vpop.f32.mrb[0].mxu0
    %v1010 = vadd.f32 0.0, %v1009
    %v1011 = vpop.f32.mrb[0].mxu0
    %v1012 = vadd.f32 0.0, %v1011
    %v1013 = vpop.f32.mrb[0].mxu0
    %v1014 = vadd.f32 0.0, %v1013
    %1015 = vdwg.mxu0
    %1016 = vmatprep.subr.bf16.mxu0 %v720
    %1017 = vmatpush1.bf16.msra.mxu0 %v719
    %1018 = vmatprep.subr.bf16.mxu0 %v728
    %1019 = vmatpush1.bf16.msra.mxu0 %v727
    %1020 = vmatprep.subr.bf16.mxu0 %v736
    %1021 = vmatpush1.bf16.msra.mxu0 %v735
    %1022 = vmatprep.subr.bf16.mxu0 %v744
    %1023 = vmatpush1.bf16.msra.mxu0 %v743
    %1024 = vmatprep.subr.bf16.mxu0 %v752
    %1025 = vmatpush1.bf16.msra.mxu0 %v751
    %1026 = vmatprep.subr.bf16.mxu0 %v760
    %1027 = vmatpush1.bf16.msra.mxu0 %v759
    %1028 = vmatprep.subr.bf16.mxu0 %v768
    %1029 = vmatpush1.bf16.msra.mxu0 %v767
    %1030 = vmatprep.subr.bf16.mxu0 %v776
    %1031 = vmatpush1.bf16.msra.mxu0 %v775
    %1032 = vmatprep.subr.bf16.mxu0 %v784
    %1033 = vmatpush1.bf16.msra.mxu0 %v783
    %1034 = vmatprep.subr.bf16.mxu0 %v792
    %1035 = vmatpush1.bf16.msra.mxu0 %v791
    %1036 = vmatprep.subr.bf16.mxu0 %v800
    %1037 = vmatpush1.bf16.msra.mxu0 %v799
    %1038 = vmatprep.subr.bf16.mxu0 %v808
    %1039 = vmatpush1.bf16.msra.mxu0 %v807
    %1040 = vmatprep.subr.bf16.mxu0 %v816
    %1041 = vmatpush1.bf16.msra.mxu0 %v815
    %1042 = vmatprep.subr.bf16.mxu0 %v824
    %1043 = vmatpush1.bf16.msra.mxu0 %v823
    %1044 = vmatprep.subr.bf16.mxu0 %v832
    %1045 = vmatpush1.bf16.msra.mxu0 %v831
    %1046 = vmatprep.subr.bf16.mxu0 %v840
    %1047 = vmatpush1.bf16.msra.mxu0 %v839
    %1048 = vmatprep.mubr.bf16.mxu0 %v204
    %1049 = vmatmul.mubr.bf16.gmra.mrb[0].mxu0 %v203
    %v1050 = vpop.f32.mrb[0].mxu0
    %v1051 = vadd.f32 0.0, %v1050
    %v1052 = vpop.f32.mrb[0].mxu0
    %v1053 = vadd.f32 0.0, %v1052
    %v1054 = vpop.f32.mrb[0].mxu0
    %v1055 = vadd.f32 0.0, %v1054
    %v1056 = vpop.f32.mrb[0].mxu0
    %v1057 = vadd.f32 0.0, %v1056
    %1058 = vdwg.mxu0
    %1059 = vmatprep.subr.bf16.mxu0 %v722
    %1060 = vmatpush1.bf16.msra.mxu0 %v721
    %1061 = vmatprep.subr.bf16.mxu0 %v730
    %1062 = vmatpush1.bf16.msra.mxu0 %v729
    %1063 = vmatprep.subr.bf16.mxu0 %v738
    %1064 = vmatpush1.bf16.msra.mxu0 %v737
    %1065 = vmatprep.subr.bf16.mxu0 %v746
    %1066 = vmatpush1.bf16.msra.mxu0 %v745
    %1067 = vmatprep.subr.bf16.mxu0 %v754
    %1068 = vmatpush1.bf16.msra.mxu0 %v753
    %1069 = vmatprep.subr.bf16.mxu0 %v762
    %1070 = vmatpush1.bf16.msra.mxu0 %v761
    %1071 = vmatprep.subr.bf16.mxu0 %v770
    %1072 = vmatpush1.bf16.msra.mxu0 %v769
    %1073 = vmatprep.subr.bf16.mxu0 %v778
    %1074 = vmatpush1.bf16.msra.mxu0 %v777
    %1075 = vmatprep.subr.bf16.mxu0 %v786
    %1076 = vmatpush1.bf16.msra.mxu0 %v785
    %1077 = vmatprep.subr.bf16.mxu0 %v794
    %1078 = vmatpush1.bf16.msra.mxu0 %v793
    %1079 = vmatprep.subr.bf16.mxu0 %v802
    %1080 = vmatpush1.bf16.msra.mxu0 %v801
    %1081 = vmatprep.subr.bf16.mxu0 %v810
    %1082 = vmatpush1.bf16.msra.mxu0 %v809
    %1083 = vmatprep.subr.bf16.mxu0 %v818
    %1084 = vmatpush1.bf16.msra.mxu0 %v817
    %1085 = vmatprep.subr.bf16.mxu0 %v826
    %1086 = vmatpush1.bf16.msra.mxu0 %v825
    %1087 = vmatprep.subr.bf16.mxu0 %v834
    %1088 = vmatpush1.bf16.msra.mxu0 %v833
    %1089 = vmatprep.subr.bf16.mxu0 %v842
    %1090 = vmatpush1.bf16.msra.mxu0 %v841
    %1091 = vmatprep.mubr.bf16.mxu0 %v204
    %1092 = vmatmul.mubr.bf16.gmra.mrb[0].mxu0 %v203
    %v1093 = vpop.f32.mrb[0].mxu0
    %v1094 = vadd.f32 0.0, %v1093
    %v1095 = vpop.f32.mrb[0].mxu0
    %v1096 = vadd.f32 0.0, %v1095
    %v1097 = vpop.f32.mrb[0].mxu0
    %v1098 = vadd.f32 0.0, %v1097
    %v1099 = vpop.f32.mrb[0].mxu0
    %v1100 = vadd.f32 0.0, %v1099
    %1101 = vdwg.mxu0
    %1102 = vmatprep.subr.bf16.mxu0 %v724
    %1103 = vmatpush1.bf16.msra.mxu0 %v723
    %1104 = vmatprep.subr.bf16.mxu0 %v732
    %1105 = vmatpush1.bf16.msra.mxu0 %v731
    %1106 = vmatprep.subr.bf16.mxu0 %v740
    %1107 = vmatpush1.bf16.msra.mxu0 %v739
    %1108 = vmatprep.subr.bf16.mxu0 %v748
    %1109 = vmatpush1.bf16.msra.mxu0 %v747
    %1110 = vmatprep.subr.bf16.mxu0 %v756
    %1111 = vmatpush1.bf16.msra.mxu0 %v755
    %1112 = vmatprep.subr.bf16.mxu0 %v764
    %1113 = vmatpush1.bf16.msra.mxu0 %v763
    %1114 = vmatprep.subr.bf16.mxu0 %v772
    %1115 = vmatpush1.bf16.msra.mxu0 %v771
    %1116 = vmatprep.subr.bf16.mxu0 %v780
    %1117 = vmatpush1.bf16.msra.mxu0 %v779
    %1118 = vmatprep.subr.bf16.mxu0 %v788
    %1119 = vmatpush1.bf16.msra.mxu0 %v787
    %1120 = vmatprep.subr.bf16.mxu0 %v796
    %1121 = vmatpush1.bf16.msra.mxu0 %v795
    %1122 = vmatprep.subr.bf16.mxu0 %v804
    %1123 = vmatpush1.bf16.msra.mxu0 %v803
    %1124 = vmatprep.subr.bf16.mxu0 %v812
    %1125 = vmatpush1.bf16.msra.mxu0 %v811
    %1126 = vmatprep.subr.bf16.mxu0 %v820
    %1127 = vmatpush1.bf16.msra.mxu0 %v819
    %1128 = vmatprep.subr.bf16.mxu0 %v828
    %1129 = vmatpush1.bf16.msra.mxu0 %v827
    %1130 = vmatprep.subr.bf16.mxu0 %v836
    %1131 = vmatpush1.bf16.msra.mxu0 %v835
    %1132 = vmatprep.subr.bf16.mxu0 %v844
    %1133 = vmatpush1.bf16.msra.mxu0 %v843
    %1134 = vmatprep.mubr.bf16.mxu0 %v204
    %1135 = vmatmul.mubr.bf16.gmra.mrb[0].mxu0 %v203
    %v1136 = vpop.f32.mrb[0].mxu0
    %v1137 = vadd.f32 0.0, %v1136
    %v1138 = vpop.f32.mrb[0].mxu0
    %v1139 = vadd.f32 0.0, %v1138
    %v1140 = vpop.f32.mrb[0].mxu0
    %v1141 = vadd.f32 0.0, %v1140
    %v1142 = vpop.f32.mrb[0].mxu0
    %v1143 = vadd.f32 0.0, %v1142
    %1144 = vdwg.mxu0
    %1145 = vst [vmem:[#allocation11] sm:$0xff] %v1008
    %1146 = vst [vmem:[#allocation11 + $0x8] sm:$0xff] %v1010
    %1147 = vst [vmem:[#allocation11 + $0x10] sm:$0xff] %v1051
    %1148 = vst [vmem:[#allocation11 + $0x18] sm:$0xff] %v1053
    %1149 = vst [vmem:[#allocation11 + $0x20] sm:$0xff] %v1094
    %1150 = vst [vmem:[#allocation11 + $0x28] sm:$0xff] %v1096
    %1151 = vst [vmem:[#allocation11 + $0x30] sm:$0xff] %v1137
    %1152 = vst [vmem:[#allocation11 + $0x38] sm:$0xff] %v1139
    %s1153 = scalar_lea.vmem [#allocation11], 64
    %1154 = vst [vmem:[%s1153] sm:$0xff] %v1012
    %1155 = vst [vmem:[%s1153 + $0x8] sm:$0xff] %v1014
    %1156 = vst [vmem:[%s1153 + $0x10] sm:$0xff] %v1055
    %1157 = vst [vmem:[%s1153 + $0x18] sm:$0xff] %v1057
    %1158 = vst [vmem:[%s1153 + $0x20] sm:$0xff] %v1098
    %1159 = vst [vmem:[%s1153 + $0x28] sm:$0xff] %v1100
    %1160 = vst [vmem:[%s1153 + $0x30] sm:$0xff] %v1141
    %1161 = vst [vmem:[%s1153 + $0x38] sm:$0xff] %v1143
    // Predicated region
    $region34: #{tpu_custom_call.1} parent=1 // pred_check
      _
    $region35: #{tpu_custom_call.1} parent=1 // pred_check_branch
      %1163 = sbr.rel (0) target = $region37
    $region36: #{tpu_custom_call.1} parent=1 // pred_region
      %s1165 = ssub.s32 2048, 2048
      %1166 = vsyncadd [#allocation5], %s1165
      %s1167 = sshll.u32 [#allocation11], 4
      %s1168 = int_to_ptr.vmem [resolvable:$true] %s1167
      %1173 = dma.vmem_to_hbm [thread:$0]  %s1168, 2048, %s4, [#allocation5], 1024, 1024, 64
    $region37: #{tpu_custom_call.1} parent=1 // pred_fallthru
      _
    // Predicated region
    $region38: #{tpu_custom_call.1} parent=1 // pred_check
      _
    $region39: #{tpu_custom_call.1} parent=1 // pred_check_branch
      %1175 = sbr.rel (0) target = $region41
    $region40: #{tpu_custom_call.1} parent=1 // pred_region
      %1176 = dma.done [#allocation5], 2048
    $region41: #{tpu_custom_call.1} parent=1 // pred_fallthru
      _
    %1177 = vsyncpa [#allocation4], 1
    %1178 = vsyncpa [#allocation7], 1
    %1179 = vsyncpa [#allocation10], 1
    %1180 = vsyncpa [#allocation5], 1

</llo_original>
